<compile_context>
chip_gen: v7x
topology: tpu7x:2x2x1
jax: 0.10.0
libtpu: 0.0.40
codegen_flags: <defaults>
</compile_context>

<pallas_src>
import jax
import jax.numpy as jnp
from jax.experimental import pallas as pl
from jax.experimental.pallas import tpu as pltpu


# ---------------------------------------------------------------------------
# Generation-aware VMEM limit (never set to the full physical capacity).
# ---------------------------------------------------------------------------
def _vmem_limit_bytes():
    cap = 128 * 1024 * 1024
    try:
        info = pltpu.get_tpu_info()
        cap = int(getattr(info, "vmem_capacity_bytes", cap)) or cap
    except Exception:
        pass
    frac = 0.72 if cap <= 64 * 1024 * 1024 else 0.78   # ~46 MiB v7x, ~100 MiB v5e/v6e
    return int(cap * frac)


_VMEM_LIMIT = _vmem_limit_bytes()


def _round_up(n, m):
    return (n + m - 1) // m * m


# ---------------------------------------------------------------------------
# In-kernel GroupNorm helper (two-pass / centered variance, all f32).
# ---------------------------------------------------------------------------
def _gn_normalize(x2d, gamma_row, beta_row, num_groups, eps):
    # x2d: (N, C) f32; gamma_row/beta_row: (1, C) f32
    N, C = x2d.shape
    cg = C // num_groups
    # channel<->group one-hot maps so the group reduce / broadcast are tiny matmuls
    c2g = (jax.lax.broadcasted_iota(jnp.int32, (C, num_groups), 0) // cg ==
           jax.lax.broadcasted_iota(jnp.int32, (C, num_groups), 1)).astype(jnp.float32)
    g2c = (jax.lax.broadcasted_iota(jnp.int32, (num_groups, C), 0) ==
           jax.lax.broadcasted_iota(jnp.int32, (num_groups, C), 1) // cg).astype(jnp.float32)
    n = float(N * cg)
    mean_g = jnp.dot(jnp.sum(x2d, axis=0, keepdims=True), c2g,
                     preferred_element_type=jnp.float32) / n          # (1, G)
    mean_c = jnp.dot(mean_g, g2c, preferred_element_type=jnp.float32)  # (1, C)
    xc = x2d - mean_c
    var_g = jnp.dot(jnp.sum(xc * xc, axis=0, keepdims=True), c2g,
                    preferred_element_type=jnp.float32) / n
    inv_g = 1.0 / jnp.sqrt(var_g + eps)
    inv_c = jnp.dot(inv_g, g2c, preferred_element_type=jnp.float32)
    return xc * inv_c * gamma_row + beta_row


# ---------------------------------------------------------------------------
# Fused [GroupNorm (+swish)] -> pad-1 -> 3x3 conv -> bias [-> +residual].
# ---------------------------------------------------------------------------
def _make_conv3x3_kernel(has_gn, swish, has_res, num_groups, eps):
    def kernel(*refs):
        idx = 0
        x_ref = refs[idx]; idx += 1
        if has_gn:
            g_ref = refs[idx]; be_ref = refs[idx + 1]; idx += 2
        w_ref = refs[idx]; b_ref = refs[idx + 1]; idx += 2
        if has_res:
            r_ref = refs[idx]; idx += 1
        o_ref = refs[idx]; xpad_ref = refs[idx + 1]; acc_ref = refs[idx + 2]

        H, W, Cin = x_ref.shape[1], x_ref.shape[2], x_ref.shape[3]
        Cout = o_ref.shape[3]

        xin = x_ref[0]                                         # (H, W, Cin)
        if has_gn:
            xf = xin.reshape(H * W, Cin).astype(jnp.float32)
            y = _gn_normalize(xf, g_ref[...].astype(jnp.float32),
                              be_ref[...].astype(jnp.float32), num_groups, eps)
            if swish:
                y = y * (1.0 / (1.0 + jnp.exp(-y)))            # swish, f32
            xin = y.reshape(H, W, Cin)

        # pad fold: zero the halo scratch, write the (normalized) interior.
        xpad_ref[...] = jnp.zeros(xpad_ref.shape, xpad_ref.dtype)
        xpad_ref[1:H + 1, 1:W + 1, :] = xin.astype(xpad_ref.dtype)

        # 3 matmuls of K=3*Cin (kw-shifts concatenated along the contraction
        # axis) instead of 9 matmuls of K=Cin; f32 VMEM accumulator.
        acc_ref[...] = jnp.zeros(acc_ref.shape, acc_ref.dtype)
        for kh in range(3):
            rows = xpad_ref[kh:kh + H, :, :]                   # (H, W+2, Cin)
            patch = jnp.concatenate(
                [rows[:, 0:W, :], rows[:, 1:W + 1, :], rows[:, 2:W + 2, :]],
                axis=-1).reshape(H * W, 3 * Cin)
            acc_ref[...] += jnp.dot(patch, w_ref[kh],
                                    preferred_element_type=jnp.float32)

        out = acc_ref[...] + b_ref[...].astype(jnp.float32)
        if has_res:
            out = out + r_ref[0].astype(jnp.float32).reshape(H * W, Cout)
        o_ref[0] = out.reshape(H, W, Cout).astype(o_ref.dtype)
    return kernel


def conv3x3_nhwc(x, w3, b2, *, gn=None, swish=False, residual=None,
                 compute_dtype=jnp.float32, num_groups=32, eps=1e-6):
    """Fused GN(+swish) -> pad1 -> 3x3 conv -> bias (+residual).

    x: (B,H,W,Cin); w3: (3, 3*Cin, Cout); b2: (1,Cout) f32;
    gn: optional dict with 'g2','b2' (1,Cin) f32; residual: optional (B,H,W,Cout).
    """
    B, H, W, Cin = x.shape
    Cout = w3.shape[2]
    cdt = compute_dtype
    has_gn = gn is not None
    has_res = residual is not None
    if has_gn:
        assert Cin % num_groups == 0

    in_specs = [pl.BlockSpec((1, H, W, Cin), lambda i: (i, 0, 0, 0))]
    args = [x]
    if has_gn:
        in_specs += [pl.BlockSpec((1, Cin), lambda i: (0, 0)),
                     pl.BlockSpec((1, Cin), lambda i: (0, 0))]
        args += [gn['g2'], gn['b2']]
    in_specs += [pl.BlockSpec((3, 3 * Cin, Cout), lambda i: (0, 0, 0)),
                 pl.BlockSpec((1, Cout), lambda i: (0, 0))]
    args += [w3.astype(cdt), b2]
    if has_res:
        in_specs.append(pl.BlockSpec((1, H, W, Cout), lambda i: (i, 0, 0, 0)))
        args.append(residual)

    isz = jnp.dtype(cdt).itemsize
    cost = pl.CostEstimate(
        flops=2 * B * H * W * 9 * Cin * Cout,
        transcendentals=(B * H * W * Cin if (has_gn and swish) else 0),
        bytes_accessed=int(isz * (x.size + w3.size + B * H * W * Cout)
                           + (isz * B * H * W * Cout if has_res else 0)),
    )
    # NOTE: one full image per grid step (fine at these resolutions).
    # TODO(synk): row-band tiling with a 2-row halo for large H*W / v7x VMEM.
    return pl.pallas_call(
        _make_conv3x3_kernel(has_gn, swish, has_res, num_groups, eps),
        out_shape=jax.ShapeDtypeStruct((B, H, W, Cout), x.dtype),
        grid_spec=pltpu.PrefetchScalarGridSpec(
            num_scalar_prefetch=0,
            grid=(B,),
            in_specs=in_specs,
            out_specs=pl.BlockSpec((1, H, W, Cout), lambda i: (i, 0, 0, 0)),
            scratch_shapes=[
                pltpu.VMEM((H + 2, W + 2, Cin), cdt),      # padded image
                pltpu.VMEM((H * W, Cout), jnp.float32),    # f32 accumulator
            ],
        ),
        compiler_params=pltpu.CompilerParams(
            dimension_semantics=("parallel",),
            vmem_limit_bytes=_VMEM_LIMIT,
        ),
        cost_estimate=cost,
    )(*args)


# ---------------------------------------------------------------------------
# Fused attention block: GroupNorm + qkv (single (C,3C) matmul) + softmax
# attention + output projection + residual add.
# ---------------------------------------------------------------------------
def _make_attn_kernel(num_groups, eps, compute_dtype):
    cdt = compute_dtype

    def kernel(x_ref, g_ref, be_ref, wqkv_ref, bqkv_ref, wp_ref, bp_ref, o_ref):
        HW, C = x_ref.shape[1], x_ref.shape[2]
        x = x_ref[0].astype(jnp.float32)                                # (HW, C)
        h = _gn_normalize(x, g_ref[...].astype(jnp.float32),
                          be_ref[...].astype(jnp.float32), num_groups, eps)
        hc = h.astype(cdt)
        qkv = jnp.dot(hc, wqkv_ref[...],
                      preferred_element_type=jnp.float32) + bqkv_ref[...]
        q = qkv[:, 0 * C:1 * C]
        k = qkv[:, 1 * C:2 * C]
        v = qkv[:, 2 * C:3 * C]
        s = jax.lax.dot_general(q.astype(cdt), k.astype(cdt),
                                (((1,), (1,)), ((), ())),
                                preferred_element_type=jnp.float32)      # (HW, HW)
        s = s * (float(C) ** -0.5)
        s = s - jnp.max(s, axis=-1, keepdims=True)                       # f32 stats
        p = jnp.exp(s)
        p = p / jnp.sum(p, axis=-1, keepdims=True)
        a = jnp.dot(p.astype(cdt), v.astype(cdt),
                    preferred_element_type=jnp.float32)                  # (HW, C)
        out = jnp.dot(a.astype(cdt), wp_ref[...],
                      preferred_element_type=jnp.float32)
        out = out + bp_ref[...].astype(jnp.float32)
        o_ref[0] = (x + out).astype(o_ref.dtype)
    return kernel


def attn_block_nhwc(x, p, *, compute_dtype=jnp.float32, num_groups=32, eps=1e-6):
    B, H, W, C = x.shape
    cdt = compute_dtype
    xf = x.reshape(B, H * W, C)
    # NOTE: full (HW, HW) scores in VMEM -- fine for decoder attention sizes.
    # TODO(synk): flash-style KV-tiled loop for very large HW.
    out = pl.pallas_call(
        _make_attn_kernel(num_groups, eps, cdt),
        out_shape=jax.ShapeDtypeStruct((B, H * W, C), x.dtype),
        grid_spec=pltpu.PrefetchScalarGridSpec(
            num_scalar_prefetch=0,
            grid=(B,),
            in_specs=[
                pl.BlockSpec((1, H * W, C), lambda i: (i, 0, 0)),
                pl.BlockSpec((1, C), lambda i: (0, 0)),
                pl.BlockSpec((1, C), lambda i: (0, 0)),
                pl.BlockSpec((C, 3 * C), lambda i: (0, 0)),
                pl.BlockSpec((1, 3 * C), lambda i: (0, 0)),
                pl.BlockSpec((C, C), lambda i: (0, 0)),
                pl.BlockSpec((1, C), lambda i: (0, 0)),
            ],
            out_specs=pl.BlockSpec((1, H * W, C), lambda i: (i, 0, 0)),
        ),
        compiler_params=pltpu.CompilerParams(
            dimension_semantics=("parallel",),
            vmem_limit_bytes=_VMEM_LIMIT,
        ),
    )(xf, p['gn']['g2'], p['gn']['b2'], p['w_qkv'].astype(cdt),
      p['b_qkv'], p['w_proj'].astype(cdt), p['b_proj'])
    return out.reshape(B, H, W, C)


# ---------------------------------------------------------------------------
# 1x1 conv as a tiled matmul + bias (ResBlock channel-matching skip).
# ---------------------------------------------------------------------------
def _matmul_bias_kernel(x_ref, w_ref, b_ref, o_ref):
    acc = jnp.dot(x_ref[...], w_ref[...], preferred_element_type=jnp.float32)
    o_ref[...] = (acc + b_ref[...].astype(jnp.float32)).astype(o_ref.dtype)


def conv1x1_nhwc(x, w_mat, b2, *, compute_dtype=jnp.float32, tile_m=512):
    B, H, W, Cin = x.shape
    Cout = w_mat.shape[1]
    M = B * H * W
    xf = x.reshape(M, Cin)
    tm = min(tile_m, _round_up(M, 8))
    Mp = _round_up(M, tm)
    if Mp != M:
        xf = jnp.pad(xf, ((0, Mp - M), (0, 0)))
    isz = jnp.dtype(compute_dtype).itemsize
    out = pl.pallas_call(
        _matmul_bias_kernel,
        out_shape=jax.ShapeDtypeStruct((Mp, Cout), x.dtype),
        grid_spec=pltpu.PrefetchScalarGridSpec(
            num_scalar_prefetch=0,
            grid=(Mp // tm,),
            in_specs=[
                pl.BlockSpec((tm, Cin), lambda i: (i, 0)),
                pl.BlockSpec((Cin, Cout), lambda i: (0, 0)),
                pl.BlockSpec((1, Cout), lambda i: (0, 0)),
            ],
            out_specs=pl.BlockSpec((tm, Cout), lambda i: (i, 0)),
        ),
        compiler_params=pltpu.CompilerParams(
            dimension_semantics=("parallel",),
            vmem_limit_bytes=_VMEM_LIMIT,
        ),
        cost_estimate=pl.CostEstimate(
            flops=2 * Mp * Cin * Cout, transcendentals=0,
            bytes_accessed=int(isz * (Mp * Cin + Cin * Cout + Mp * Cout))),
    )(xf, w_mat.astype(compute_dtype), b2)
    return out[:M].reshape(B, H, W, Cout)


def upsample_nearest2_nhwc(x):
    # F.interpolate(scale_factor=2, mode='nearest') == repeat each pixel 2x2.
    # TODO(synk): fold into the following conv3x3 kernel to avoid the 4x HBM
    # intermediate (replicate rows/cols into the padded VMEM scratch).
    return jnp.repeat(jnp.repeat(x, 2, axis=1), 2, axis=2)


# ---------------------------------------------------------------------------
# Parameter construction (mirrors Generator.__init__ block order).
# ---------------------------------------------------------------------------
def _conv_init(key, cin, cout, ksize):
    kw, kb = jax.random.split(key)
    fan_in = cin * ksize * ksize
    bound = 1.0 / (fan_in ** 0.5)
    w = jax.random.uniform(kw, (cout, cin, ksize, ksize), jnp.float32, -bound, bound)
    b = jax.random.uniform(kb, (cout,), jnp.float32, -bound, bound)
    return w, b


def _conv3_params(key, cin, cout):
    w, b = _conv_init(key, cin, cout, 3)
    # (kh, kw, Cin, Cout) -> (3, 3*Cin, Cout): kw-shifts concatenated along K.
    w3 = jnp.transpose(w, (2, 3, 1, 0)).reshape(3, 3 * cin, cout)
    return {'w': w, 'b': b, 'w3': w3, 'b2': b.reshape(1, cout)}


def _conv1_params(key, cin, cout):
    w, b = _conv_init(key, cin, cout, 1)
    return {'w': w, 'b': b,
            'wmat': jnp.transpose(w[:, :, 0, 0], (1, 0)),
            'b2': b.reshape(1, cout)}


def _gn_params(key, c):
    kg, kb = jax.random.split(key)
    gamma = 1.0 + 0.05 * jax.random.normal(kg, (c,), jnp.float32)
    beta = 0.05 * jax.random.normal(kb, (c,), jnp.float32)
    return {'gamma': gamma, 'beta': beta,
            'g2': gamma.reshape(1, c), 'b2': beta.reshape(1, c)}


def init_generator_params(key, nf, emb_dim, ch_mult, res_blocks, img_size,
                          attn_resolutions):
    keys = iter(jax.random.split(key, 256))
    blocks = []
    num_resolutions = len(ch_mult)
    block_in_ch = nf * ch_mult[-1]
    curr_res = img_size // 2 ** (num_resolutions - 1)

    def res_params(cin, cout):
        p = {'kind': 'res',
             'gn1': _gn_params(next(keys), cin),
             'conv1': _conv3_params(next(keys), cin, cout),
             'gn2': _gn_params(next(keys), cout),
             'conv2': _conv3_params(next(keys), cout, cout)}
        if cin != cout:
            p['skip'] = _conv1_params(next(keys), cin, cout)
        return p

    def attn_params(c):
        wq = _conv1_params(next(keys), c, c)
        wk = _conv1_params(next(keys), c, c)
        wv = _conv1_params(next(keys), c, c)
        wp = _conv1_params(next(keys), c, c)
        return {'kind': 'attn',
                'gn': _gn_params(next(keys), c),
                'q': wq, 'k': wk, 'v': wv, 'proj': wp,
                # kernel-ready fused qkv weights / biases: (C, 3C) / (1, 3C)
                'w_qkv': jnp.concatenate([wq['wmat'], wk['wmat'], wv['wmat']], axis=1),
                'b_qkv': jnp.concatenate([wq['b2'], wk['b2'], wv['b2']], axis=1),
                'w_proj': wp['wmat'], 'b_proj': wp['b2']}

    blocks.append({'kind': 'conv3', 'conv': _conv3_params(next(keys), emb_dim, block_in_ch)})
    blocks.append(res_params(block_in_ch, block_in_ch))
    blocks.append(attn_params(block_in_ch))
    blocks.append(res_params(block_in_ch, block_in_ch))
    for i in reversed(range(num_resolutions)):
        block_out_ch = nf * ch_mult[i]
        for _ in range(res_blocks):
            blocks.append(res_params(block_in_ch, block_out_ch))
            block_in_ch = block_out_ch
            if curr_res in attn_resolutions:
                blocks.append(attn_params(block_in_ch))
        if i != 0:
            blocks.append({'kind': 'up',
                           'conv': _conv3_params(next(keys), block_in_ch, block_in_ch)})
            curr_res = curr_res * 2
    # final GroupNorm fused into the final RGB conv's kernel prologue
    blocks.append({'kind': 'gn_conv3',
                   'gn': _gn_params(next(keys), block_in_ch),
                   'conv': _conv3_params(next(keys), block_in_ch, 3)})
    return blocks


# ---------------------------------------------------------------------------
# Pallas forward (NCHW in / NCHW out, NHWC + compute_dtype internally).
# ---------------------------------------------------------------------------
def generator_forward(blocks, x_nchw, compute_dtype=jnp.float32):
    cdt = compute_dtype
    x = jnp.transpose(x_nchw, (0, 2, 3, 1)).astype(cdt)       # NHWC once at entry
    for p in blocks:
        kind = p['kind']
        if kind == 'conv3':
            x = conv3x3_nhwc(x, p['conv']['w3'], p['conv']['b2'], compute_dtype=cdt)
        elif kind == 'res':
            h = conv3x3_nhwc(x, p['conv1']['w3'], p['conv1']['b2'],
                             gn=p['gn1'], swish=True, compute_dtype=cdt)
            skip = x
            if 'skip' in p:
                skip = conv1x1_nhwc(x, p['skip']['wmat'], p['skip']['b2'],
                                    compute_dtype=cdt)
            # GN+swish prologue, residual epilogue fused into conv2's kernel
            x = conv3x3_nhwc(h, p['conv2']['w3'], p['conv2']['b2'],
                             gn=p['gn2'], swish=True, residual=skip,
                             compute_dtype=cdt)
        elif kind == 'attn':
            x = attn_block_nhwc(x, p, compute_dtype=cdt)
        elif kind == 'up':
            x = upsample_nearest2_nhwc(x)
            x = conv3x3_nhwc(x, p['conv']['w3'], p['conv']['b2'], compute_dtype=cdt)
        elif kind == 'gn_conv3':
            x = conv3x3_nhwc(x, p['conv']['w3'], p['conv']['b2'],
                             gn=p['gn'], swish=False, compute_dtype=cdt)
    return jnp.transpose(x, (0, 3, 1, 2))                      # back to NCHW


# ---------------------------------------------------------------------------
# Pure-XLA reference with PyTorch semantics (NCHW, f32), used for the check.
# ---------------------------------------------------------------------------
def _ref_conv2d(x, w, b, pad):
    out = jax.lax.conv_general_dilated(
        x, w, window_strides=(1, 1), padding=((pad, pad), (pad, pad)),
        dimension_numbers=("NCHW", "OIHW", "NCHW"))
    return out + b[None, :, None, None]


def _ref_groupnorm(x, gamma, beta, num_groups=32, eps=1e-6):
    B, C, H, W = x.shape
    xg = x.reshape(B, num_groups, (C // num_groups) * H * W)
    mean = xg.mean(axis=-1, keepdims=True)
    var = xg.var(axis=-1, keepdims=True)
    xn = ((xg - mean) / jnp.sqrt(var + eps)).reshape(B, C, H, W)
    return xn * gamma[None, :, None, None] + beta[None, :, None, None]


def generator_forward_ref(blocks, x):
    for p in blocks:
        kind = p['kind']
        if kind == 'conv3':
            x = _ref_conv2d(x, p['conv']['w'], p['conv']['b'], 1)
        elif kind == 'res':
            h = _ref_groupnorm(x, p['gn1']['gamma'], p['gn1']['beta'])
            h = h * jax.nn.sigmoid(h)
            h = _ref_conv2d(h, p['conv1']['w'], p['conv1']['b'], 1)
            h = _ref_groupnorm(h, p['gn2']['gamma'], p['gn2']['beta'])
            h = h * jax.nn.sigmoid(h)
            h = _ref_conv2d(h, p['conv2']['w'], p['conv2']['b'], 1)
            skip = x
            if 'skip' in p:
                skip = _ref_conv2d(x, p['skip']['w'], p['skip']['b'], 0)
            x = h + skip
        elif kind == 'attn':
            h = _ref_groupnorm(x, p['gn']['gamma'], p['gn']['beta'])
            q = _ref_conv2d(h, p['q']['w'], p['q']['b'], 0)
            kk = _ref_conv2d(h, p['k']['w'], p['k']['b'], 0)
            v = _ref_conv2d(h, p['v']['w'], p['v']['b'], 0)
            B, C, H, W = q.shape
            qf = q.reshape(B, C, H * W).transpose(0, 2, 1)          # (B, HW, C)
            kf = kk.reshape(B, C, H * W)                            # (B, C, HW)
            w_ = jnp.einsum('bqc,bck->bqk', qf, kf) * (float(C) ** -0.5)
            w_ = jax.nn.softmax(w_, axis=2)
            vf = v.reshape(B, C, H * W)
            hf = jnp.einsum('bck,bqk->bcq', vf, w_).reshape(B, C, H, W)
            x = x + _ref_conv2d(hf, p['proj']['w'], p['proj']['b'], 0)
        elif kind == 'up':
            x = jnp.repeat(jnp.repeat(x, 2, axis=2), 2, axis=3)
            x = _ref_conv2d(x, p['conv']['w'], p['conv']['b'], 1)
        elif kind == 'gn_conv3':
            x = _ref_groupnorm(x, p['gn']['gamma'], p['gn']['beta'])
            x = _ref_conv2d(x, p['conv']['w'], p['conv']['b'], 1)
    return x


if __name__ == "__main__":
    key = jax.random.PRNGKey(0)
    k_params, k_x = jax.random.split(key)

    # Small Generator config: nf=32, emb_dim=32, ch_mult=(1, 2), one ResBlock
    # per resolution, img_size=16, attention at resolution 8.
    nf, emb_dim, ch_mult, res_blocks = 32, 32, (1, 2), 1
    img_size, attn_resolutions = 16, (8,)

    blocks = init_generator_params(k_params, nf, emb_dim, ch_mult, res_blocks,
                                   img_size, attn_resolutions)

    B = 2
    in_res = img_size // 2 ** (len(ch_mult) - 1)        # 8
    x = jax.random.normal(k_x, (B, emb_dim, in_res, in_res), jnp.float32)

    ref = jax.block_until_ready(generator_forward_ref(blocks, x))

    # 1) f32 path: tight correctness check against the PyTorch-semantics ref.
    out_f32 = jax.block_until_ready(generator_forward(blocks, x, jnp.float32))
    assert out_f32.shape == (B, 3, img_size, img_size), out_f32.shape
    err32 = jnp.max(jnp.abs(out_f32 - ref))
    assert jnp.allclose(out_f32, ref, atol=2e-3, rtol=2e-3), f"f32 max abs err {err32}"

    # 2) bf16 fast path (bf16 MXU operands, f32 stats/accumulators): sanity
    #    check at a tolerance consistent with bf16 operand rounding.
    out_bf16 = jax.block_until_ready(
        generator_forward(blocks, x, jnp.bfloat16)).astype(jnp.float32)
    assert out_bf16.shape == (B, 3, img_size, img_size), out_bf16.shape
    errbf = jnp.max(jnp.abs(out_bf16 - ref))
    assert jnp.allclose(out_bf16, ref, atol=1.5e-1, rtol=1.5e-1), \
        f"bf16 max abs err {errbf}"

    print("KERNEL_OK")
</pallas_src>

<mosaic_0001>
module attributes {stable_mosaic.version = 11 : i64} {
  func.func @kernel(%arg0: i32, %arg1: memref<1x8x8x32xf32, #tpu.memory_space<vmem>>, %arg2: memref<3x96x64xf32, #tpu.memory_space<vmem>>, %arg3: memref<1x64xf32, #tpu.memory_space<vmem>>, %arg4: memref<1x8x8x64xf32, #tpu.memory_space<vmem>>, %arg5: memref<10x10x32xf32, #tpu.memory_space<vmem>>, %arg6: memref<64x64xf32, #tpu.memory_space<vmem>>) attributes {dimension_semantics = [#tpu.dimension_semantics<parallel>], iteration_bounds = array<i64: 2>, scalar_prefetch = 0 : i64, scratch_operands = 2 : i64, tpu.core_type = #tpu.core_type<tc>, window_params = [{transform_indices = @transform_0, window_bounds = array<i64: 1, 8, 8, 32>}, {pipeline_mode = #tpu.pipeline_mode<synchronous>, transform_indices = @transform_1, window_bounds = array<i64: 3, 96, 64>}, {pipeline_mode = #tpu.pipeline_mode<synchronous>, transform_indices = @transform_2, window_bounds = array<i64: 1, 64>}, {transform_indices = @transform_3, window_bounds = array<i64: 1, 8, 8, 64>}]} {
    %c0 = arith.constant 0 : index
    %c0_0 = arith.constant 0 : index
    %c0_1 = arith.constant 0 : index
    %c0_2 = arith.constant 0 : index
    %0 = vector.load %arg1[%c0, %c0_0, %c0_1, %c0_2] : memref<1x8x8x32xf32, #tpu.memory_space<vmem>>, vector<1x8x8x32xf32>
    %1 = vector.shape_cast %0 : vector<1x8x8x32xf32> to vector<8x8x32xf32>
    %cst = arith.constant 0.000000e+00 : f32
    %2 = vector.broadcast %cst : f32 to vector<10x10x32xf32>
    %c0_3 = arith.constant 0 : index
    %c0_4 = arith.constant 0 : index
    %c0_5 = arith.constant 0 : index
    %3 = vector.load %arg5[%c0_3, %c0_4, %c0_5] : memref<10x10x32xf32, #tpu.memory_space<vmem>>, vector<10x10x32xf32>
    tpu.vector_store %arg5[%c0_3, %c0_4, %c0_5], %2 {strides = array<i32>} : memref<10x10x32xf32, #tpu.memory_space<vmem>>, vector<10x10x32xf32>,
    %c1 = arith.constant 1 : index
    %c1_6 = arith.constant 1 : index
    %c0_7 = arith.constant 0 : index
    %4 = vector.load %arg5[%c1, %c1_6, %c0_7] : memref<10x10x32xf32, #tpu.memory_space<vmem>>, vector<8x8x32xf32>
    tpu.vector_store %arg5[%c1, %c1_6, %c0_7], %1 {strides = array<i32>} : memref<10x10x32xf32, #tpu.memory_space<vmem>>, vector<8x8x32xf32>,
    %cst_8 = arith.constant 0.000000e+00 : f32
    %5 = vector.broadcast %cst_8 : f32 to vector<64x64xf32>
    %c0_9 = arith.constant 0 : index
    %c0_10 = arith.constant 0 : index
    %6 = vector.load %arg6[%c0_9, %c0_10] : memref<64x64xf32, #tpu.memory_space<vmem>>, vector<64x64xf32>
    tpu.vector_store %arg6[%c0_9, %c0_10], %5 {strides = array<i32>} : memref<64x64xf32, #tpu.memory_space<vmem>>, vector<64x64xf32>,
    %c0_11 = arith.constant 0 : index
    %c0_12 = arith.constant 0 : index
    %c0_13 = arith.constant 0 : index
    %7 = vector.load %arg5[%c0_11, %c0_12, %c0_13] : memref<10x10x32xf32, #tpu.memory_space<vmem>>, vector<8x10x32xf32>
    %8 = vector.extract_strided_slice %7 {offsets = [0, 0, 0], sizes = [8, 8, 32], strides = [1, 1, 1]} : vector<8x10x32xf32> to vector<8x8x32xf32>
    %9 = vector.extract_strided_slice %7 {offsets = [0, 1, 0], sizes = [8, 8, 32], strides = [1, 1, 1]} : vector<8x10x32xf32> to vector<8x8x32xf32>
    %10 = vector.extract_strided_slice %7 {offsets = [0, 2, 0], sizes = [8, 8, 32], strides = [1, 1, 1]} : vector<8x10x32xf32> to vector<8x8x32xf32>
    %11 = tpu.concatenate %8, %9, %10 in 2 : vector<8x8x32xf32>, vector<8x8x32xf32>, vector<8x8x32xf32> -> vector<8x8x96xf32>
    %12 = vector.shape_cast %11 : vector<8x8x96xf32> to vector<64x96xf32>
    %c0_14 = arith.constant 0 : index
    %c0_15 = arith.constant 0 : index
    %13 = vector.load %arg6[%c0_14, %c0_15] : memref<64x64xf32, #tpu.memory_space<vmem>>, vector<64x64xf32>
    %c0_16 = arith.constant 0 : index
    %c0_17 = arith.constant 0 : index
    %c0_18 = arith.constant 0 : index
    %14 = vector.load %arg2[%c0_16, %c0_17, %c0_18] : memref<3x96x64xf32, #tpu.memory_space<vmem>>, vector<1x96x64xf32>
    %15 = vector.shape_cast %14 : vector<1x96x64xf32> to vector<96x64xf32>
    %cst_19 = arith.constant dense<0.000000e+00> : vector<64x64xf32>
    %16 = tpu.matmul %12, %15, %cst_19 {dimension_numbers = #tpu.dot_dimension_numbers<[1], [0], [0], [1], [0, 0, 1, 1], [], []>} : vector<64x96xf32>, vector<96x64xf32>, vector<64x64xf32> -> vector<64x64xf32>
    %17 = arith.addf %13, %16 : vector<64x64xf32>
    %c0_20 = arith.constant 0 : index
    %c0_21 = arith.constant 0 : index
    %18 = vector.load %arg6[%c0_20, %c0_21] : memref<64x64xf32, #tpu.memory_space<vmem>>, vector<64x64xf32>
    tpu.vector_store %arg6[%c0_20, %c0_21], %17 {strides = array<i32>} : memref<64x64xf32, #tpu.memory_space<vmem>>, vector<64x64xf32>,
    %c1_22 = arith.constant 1 : index
    %c0_23 = arith.constant 0 : index
    %c0_24 = arith.constant 0 : index
    %19 = vector.load %arg5[%c1_22, %c0_23, %c0_24] : memref<10x10x32xf32, #tpu.memory_space<vmem>>, vector<8x10x32xf32>
    %20 = vector.extract_strided_slice %19 {offsets = [0, 0, 0], sizes = [8, 8, 32], strides = [1, 1, 1]} : vector<8x10x32xf32> to vector<8x8x32xf32>
    %21 = vector.extract_strided_slice %19 {offsets = [0, 1, 0], sizes = [8, 8, 32], strides = [1, 1, 1]} : vector<8x10x32xf32> to vector<8x8x32xf32>
    %22 = vector.extract_strided_slice %19 {offsets = [0, 2, 0], sizes = [8, 8, 32], strides = [1, 1, 1]} : vector<8x10x32xf32> to vector<8x8x32xf32>
    %23 = tpu.concatenate %20, %21, %22 in 2 : vector<8x8x32xf32>, vector<8x8x32xf32>, vector<8x8x32xf32> -> vector<8x8x96xf32>
    %24 = vector.shape_cast %23 : vector<8x8x96xf32> to vector<64x96xf32>
    %c0_25 = arith.constant 0 : index
    %c0_26 = arith.constant 0 : index
    %25 = vector.load %arg6[%c0_25, %c0_26] : memref<64x64xf32, #tpu.memory_space<vmem>>, vector<64x64xf32>
    %c1_27 = arith.constant 1 : index
    %c0_28 = arith.constant 0 : index
    %c0_29 = arith.constant 0 : index
    %26 = vector.load %arg2[%c1_27, %c0_28, %c0_29] : memref<3x96x64xf32, #tpu.memory_space<vmem>>, vector<1x96x64xf32>
    %27 = vector.shape_cast %26 : vector<1x96x64xf32> to vector<96x64xf32>
    %cst_30 = arith.constant dense<0.000000e+00> : vector<64x64xf32>
    %28 = tpu.matmul %24, %27, %cst_30 {dimension_numbers = #tpu.dot_dimension_numbers<[1], [0], [0], [1], [0, 0, 1, 1], [], []>} : vector<64x96xf32>, vector<96x64xf32>, vector<64x64xf32> -> vector<64x64xf32>
    %29 = arith.addf %25, %28 : vector<64x64xf32>
    %c0_31 = arith.constant 0 : index
    %c0_32 = arith.constant 0 : index
    %30 = vector.load %arg6[%c0_31, %c0_32] : memref<64x64xf32, #tpu.memory_space<vmem>>, vector<64x64xf32>
    tpu.vector_store %arg6[%c0_31, %c0_32], %29 {strides = array<i32>} : memref<64x64xf32, #tpu.memory_space<vmem>>, vector<64x64xf32>,
    %c2 = arith.constant 2 : index
    %c0_33 = arith.constant 0 : index
    %c0_34 = arith.constant 0 : index
    %31 = vector.load %arg5[%c2, %c0_33, %c0_34] : memref<10x10x32xf32, #tpu.memory_space<vmem>>, vector<8x10x32xf32>
    %32 = vector.extract_strided_slice %31 {offsets = [0, 0, 0], sizes = [8, 8, 32], strides = [1, 1, 1]} : vector<8x10x32xf32> to vector<8x8x32xf32>
    %33 = vector.extract_strided_slice %31 {offsets = [0, 1, 0], sizes = [8, 8, 32], strides = [1, 1, 1]} : vector<8x10x32xf32> to vector<8x8x32xf32>
    %34 = vector.extract_strided_slice %31 {offsets = [0, 2, 0], sizes = [8, 8, 32], strides = [1, 1, 1]} : vector<8x10x32xf32> to vector<8x8x32xf32>
    %35 = tpu.concatenate %32, %33, %34 in 2 : vector<8x8x32xf32>, vector<8x8x32xf32>, vector<8x8x32xf32> -> vector<8x8x96xf32>
    %36 = vector.shape_cast %35 : vector<8x8x96xf32> to vector<64x96xf32>
    %c0_35 = arith.constant 0 : index
    %c0_36 = arith.constant 0 : index
    %37 = vector.load %arg6[%c0_35, %c0_36] : memref<64x64xf32, #tpu.memory_space<vmem>>, vector<64x64xf32>
    %c2_37 = arith.constant 2 : index
    %c0_38 = arith.constant 0 : index
    %c0_39 = arith.constant 0 : index
    %38 = vector.load %arg2[%c2_37, %c0_38, %c0_39] : memref<3x96x64xf32, #tpu.memory_space<vmem>>, vector<1x96x64xf32>
    %39 = vector.shape_cast %38 : vector<1x96x64xf32> to vector<96x64xf32>
    %cst_40 = arith.constant dense<0.000000e+00> : vector<64x64xf32>
    %40 = tpu.matmul %36, %39, %cst_40 {dimension_numbers = #tpu.dot_dimension_numbers<[1], [0], [0], [1], [0, 0, 1, 1], [], []>} : vector<64x96xf32>, vector<96x64xf32>, vector<64x64xf32> -> vector<64x64xf32>
    %41 = arith.addf %37, %40 : vector<64x64xf32>
    %c0_41 = arith.constant 0 : index
    %c0_42 = arith.constant 0 : index
    %42 = vector.load %arg6[%c0_41, %c0_42] : memref<64x64xf32, #tpu.memory_space<vmem>>, vector<64x64xf32>
    tpu.vector_store %arg6[%c0_41, %c0_42], %41 {strides = array<i32>} : memref<64x64xf32, #tpu.memory_space<vmem>>, vector<64x64xf32>,
    %c0_43 = arith.constant 0 : index
    %c0_44 = arith.constant 0 : index
    %43 = vector.load %arg6[%c0_43, %c0_44] : memref<64x64xf32, #tpu.memory_space<vmem>>, vector<64x64xf32>
    %c0_45 = arith.constant 0 : index
    %c0_46 = arith.constant 0 : index
    %44 = vector.load %arg3[%c0_45, %c0_46] : memref<1x64xf32, #tpu.memory_space<vmem>>, vector<1x64xf32>
    %45 = vector.broadcast %44 : vector<1x64xf32> to vector<64x64xf32>
    %46 = arith.addf %43, %45 : vector<64x64xf32>
    %47 = vector.shape_cast %46 : vector<64x64xf32> to vector<8x8x64xf32>
    %c0_47 = arith.constant 0 : index
    %c0_48 = arith.constant 0 : index
    %c0_49 = arith.constant 0 : index
    %c0_50 = arith.constant 0 : index
    %48 = vector.load %arg4[%c0_47, %c0_48, %c0_49, %c0_50] : memref<1x8x8x64xf32, #tpu.memory_space<vmem>>, vector<1x8x8x64xf32>
    %49 = vector.shape_cast %48 : vector<1x8x8x64xf32> to vector<8x8x64xf32>
    %50 = vector.shape_cast %47 : vector<8x8x64xf32> to vector<1x8x8x64xf32>
    tpu.vector_store %arg4[%c0_47, %c0_48, %c0_49, %c0_50], %50 {strides = array<i32>} : memref<1x8x8x64xf32, #tpu.memory_space<vmem>>, vector<1x8x8x64xf32>,
    return
  }
  func.func @transform_0(%arg0: i32) -> (i32, i32, i32, i32) {
    %c0_i32 = arith.constant 0 : i32
    %c0_i32_0 = arith.constant 0 : i32
    %c0_i32_1 = arith.constant 0 : i32
    %c0_i32_2 = arith.constant 0 : i32
    return %arg0, %c0_i32, %c0_i32_0, %c0_i32_1 : i32, i32, i32, i32
  }
  func.func @transform_1(%arg0: i32) -> (i32, i32, i32) {
    %c0_i32 = arith.constant 0 : i32
    %c0_i32_0 = arith.constant 0 : i32
    %c0_i32_1 = arith.constant 0 : i32
    %c0_i32_2 = arith.constant 0 : i32
    return %c0_i32, %c0_i32_0, %c0_i32_1 : i32, i32, i32
  }
  func.func @transform_2(%arg0: i32) -> (i32, i32) {
    %c0_i32 = arith.constant 0 : i32
    %c0_i32_0 = arith.constant 0 : i32
    %c0_i32_1 = arith.constant 0 : i32
    return %c0_i32, %c0_i32_0 : i32, i32
  }
  func.func @transform_3(%arg0: i32) -> (i32, i32, i32, i32) {
    %c0_i32 = arith.constant 0 : i32
    %c0_i32_0 = arith.constant 0 : i32
    %c0_i32_1 = arith.constant 0 : i32
    %c0_i32_2 = arith.constant 0 : i32
    return %arg0, %c0_i32, %c0_i32_0, %c0_i32_1 : i32, i32, i32, i32
  }
}

</mosaic_0001>

<llo_original>
// kernel: tpu_custom_call.1
$region0: #{tpu_custom_call.1}
  #allocation0 [shape = 'u32[]', space=smem, size = 0x4, offset = 0x4, fixed_abs, tag = 'smem constant byte address 0x4 - core index']
  #allocation1 [shape = 'u32[144,128]{1,0:T(1,128)}', space=vmem, size = 0x12000, scoped, tag = 'internal scratch']
  #allocation2 [shape = 'f32[10,10,32]{2,1,0:T(8,128)}', space=vmem, size = 0x14000, scoped, tag = 'scratch operand']
  #allocation3 [shape = 'f32[64,64]{1,0:T(8,128)}', space=vmem, size = 0x8000, scoped, tag = 'scratch operand']
  %s0 = inlined_call_operand.hbm [shape: f32[2,8,8,32], index: 0, kind: input, shape index: {}]
  %s1 = inlined_call_operand.hbm [shape: f32[3,96,64], index: 1, kind: input, shape index: {}]
  %s2 = inlined_call_operand.hbm [shape: f32[1,64], index: 2, kind: input, shape index: {}]
  %s3 = inlined_call_operand.hbm [shape: f32[2,8,8,64], index: 3, kind: output, shape index: {}]
  %s4 = sld [smem:[#allocation0]]
  $region57: #{tpu_custom_call.1} parent=0
    _
  %s6 = ssub.s32 1, %s4
  %s7 = scalar_select 0, %s6, %s4
  $region1: #{tpu_custom_call.1} parent=0
    #allocation4 [shape = 'u8[65536]{0}', space=vmem, size = 0x10000, scoped, tag = 'input window, operand 0']
    #allocation5 [shape = 's32[2]{0}', space=sflag, size = 0x8, scoped, tag = 'scoped memory for tpu_custom_call.1']
    #allocation6 [shape = 's32[2]{0}', space=sflag, size = 0x8, scoped, tag = 'scoped memory for tpu_custom_call.1']
    #allocation7 [shape = 'u8[147456]{0}', space=vmem, size = 0x24000, scoped, tag = 'input window, operand 1, single buffered']
    #allocation8 [shape = 's32[1]{0}', space=sflag, size = 0x4, scoped, tag = 'scoped memory for tpu_custom_call.1']
    #allocation9 [shape = 'u8[512]{0}', space=vmem, size = 0x400, scoped, tag = 'input window, operand 2, single buffered']
    #allocation10 [shape = 'u8[65536]{0}', space=vmem, size = 0x10000, scoped, tag = 'output window, operand 0']
    %8 = vsyncpa [#allocation5], 0
    %s9 = scalar_lea.sflag [#allocation5], 1
    %10 = vsyncpa %s9, 0
    %11 = vsyncpa [#allocation8], 0
    %12 = vsyncpa [#allocation6], 0
    %s13 = scalar_lea.sflag [#allocation6], 1
    %14 = vsyncpa %s13, 0
    loop: start=0, step=1, limit=4
    $region2: #{tpu_custom_call.1} parent=1 // loop_pre_header
      _
    $region3: #{tpu_custom_call.1} parent=1 // loop_header
      %s16 = sphi 0, %s20
      %p17 = scmp.ge.s32.totalorder %s16, 4
      %s26 = sphi 0, %s28
      %s29 = sphi 0, %s26
      %s30 = sphi 0, %s29
      %s46 = sphi 0, %s30
      %s50 = sphi 0, %s50
      %s52 = sphi 0, %s50
      %s53 = sphi 0, %s52
      %s67 = sphi 0, %s53
      %s71 = sphi 0, %s71
      %s73 = sphi 0, %s71
      %s74 = sphi 0, %s73
      %s88 = sphi 0, %s74
      %s94 = sphi 0, %s96
      %s97 = sphi 0, %s94
      %s98 = sphi 0, %s97
      %s114 = sphi 0, %s98
    $region4: #{tpu_custom_call.1} parent=1 // loop_header_branch
      %19 = sbr.rel (%p17) target = $region8
    $region5: #{tpu_custom_call.1} parent=1 // loop_body
      %s21 = ssub.s32 %s16, 1
      %s22 = ssub.s32 %s16, 2
      %s23 = sadd.s32 %s16, 1
      %s24 = ssub.s32 %s16, %s23
      %p25 = scmp.eq.s32.totalorder %s24, 0
      %s27 = sadd.s32 %s26, 1
      %s28 = scalar_select %p25, %s26, %s27
      %p31 = pneg %p25
      %p32 = scmp.eq.s32.totalorder %s16, 1
      %p33 = por %p31, %p32
      %p34 = scmp.ne.s32.totalorder %s26, %s29
      %p35 = scmp.eq.s32.totalorder %s16, 0
      %p36 = por %p34, %p35
      %p37 = scmp.ne.s32.totalorder %s26, %s29
      %p38 = scmp.eq.s32.totalorder %s21, 1
      %p39 = por %p37, %p38
      %p40 = scmp.ne.s32.totalorder %s29, %s30
      %p41 = scmp.eq.s32.totalorder %s21, 0
      %p42 = por %p40, %p41
      %p43 = scmp.ne.s32.totalorder %s29, %s30
      %p44 = scmp.eq.s32.totalorder %s22, 1
      %p45 = por %p43, %p44
      %p47 = scmp.ne.s32.totalorder %s30, %s46
      %p48 = scmp.eq.s32.totalorder %s22, 0
      %p49 = por %p47, %p48
      %s51 = sadd.s32 %s50, 1
      %p54 = scmp.eq.s32.totalorder %s16, 1
      %p55 = scmp.ne.s32.totalorder %s50, %s52
      %p56 = scmp.eq.s32.totalorder %s16, 0
      %p57 = por %p55, %p56
      %p58 = scmp.ne.s32.totalorder %s50, %s52
      %p59 = scmp.eq.s32.totalorder %s21, 1
      %p60 = por %p58, %p59
      %p61 = scmp.ne.s32.totalorder %s52, %s53
      %p62 = scmp.eq.s32.totalorder %s21, 0
      %p63 = por %p61, %p62
      %p64 = scmp.ne.s32.totalorder %s52, %s53
      %p65 = scmp.eq.s32.totalorder %s22, 1
      %p66 = por %p64, %p65
      %p68 = scmp.ne.s32.totalorder %s53, %s67
      %p69 = scmp.eq.s32.totalorder %s22, 0
      %p70 = por %p68, %p69
      %s72 = sadd.s32 %s71, 1
      %p75 = scmp.eq.s32.totalorder %s16, 1
      %p76 = scmp.ne.s32.totalorder %s71, %s73
      %p77 = scmp.eq.s32.totalorder %s16, 0
      %p78 = por %p76, %p77
      %p79 = scmp.ne.s32.totalorder %s71, %s73
      %p80 = scmp.eq.s32.totalorder %s21, 1
      %p81 = por %p79, %p80
      %p82 = scmp.ne.s32.totalorder %s73, %s74
      %p83 = scmp.eq.s32.totalorder %s21, 0
      %p84 = por %p82, %p83
      %p85 = scmp.ne.s32.totalorder %s73, %s74
      %p86 = scmp.eq.s32.totalorder %s22, 1
      %p87 = por %p85, %p86
      %p89 = scmp.ne.s32.totalorder %s74, %s88
      %p90 = scmp.eq.s32.totalorder %s22, 0
      %p91 = por %p89, %p90
      %s92 = ssub.s32 %s16, %s23
      %p93 = scmp.eq.s32.totalorder %s92, 0
      %s95 = sadd.s32 %s94, 1
      %s96 = scalar_select %p93, %s94, %s95
      %p99 = pneg %p93
      %p100 = scmp.eq.s32.totalorder %s16, 1
      %p101 = por %p99, %p100
      %p102 = scmp.ne.s32.totalorder %s94, %s97
      %p103 = scmp.eq.s32.totalorder %s16, 0
      %p104 = por %p102, %p103
      %p105 = scmp.ne.s32.totalorder %s94, %s97
      %p106 = scmp.eq.s32.totalorder %s21, 1
      %p107 = por %p105, %p106
      %p108 = scmp.ne.s32.totalorder %s97, %s98
      %p109 = scmp.eq.s32.totalorder %s21, 0
      %p110 = por %p108, %p109
      %p111 = scmp.ne.s32.totalorder %s97, %s98
      %p112 = scmp.eq.s32.totalorder %s22, 1
      %p113 = por %p111, %p112
      %p115 = scmp.ne.s32.totalorder %s98, %s114
      %p116 = scmp.eq.s32.totalorder %s22, 0
      %p117 = por %p115, %p116
      %p118 = scmp.le.s32.totalorder 1, %s16
      %p119 = scmp.lt.s32.totalorder %s16, 3
      %p120 = pnand %p118, %p119
      %p121 = pneg %p120
      // Predicated region
      $region9: #{tpu_custom_call.1} parent=5 // pred_check
        _
      $region10: #{tpu_custom_call.1} parent=5 // pred_check_branch
        %123 = sbr.rel (%p120) target = $region12
      $region11: #{tpu_custom_call.1} parent=5 // pred_region
        %s124 = ssub.s32 %s16, 1
        // Predicated region
        $region13: #{tpu_custom_call.1} parent=11 // pred_check
          %p125 = pneg %p63
        $region14: #{tpu_custom_call.1} parent=11 // pred_check_branch
          %127 = sbr.rel (%p125) target = $region16
        $region15: #{tpu_custom_call.1} parent=11 // pred_region
          %s129 = ssub.s32 4608, 4608
          %130 = vsyncadd [#allocation8], %s129
          %s131 = sshll.u32 [#allocation7], 4
          %s132 = int_to_ptr.vmem [resolvable:$true] %s131
          %137 = dma.hbm_to_vmem [thread:$0]  %s1, 4608, %s132, [#allocation8], 128, 128, 8
        $region16: #{tpu_custom_call.1} parent=11 // pred_fallthru
          _
        // Predicated region
        $region17: #{tpu_custom_call.1} parent=11 // pred_check
          %p138 = pneg %p84
        $region18: #{tpu_custom_call.1} parent=11 // pred_check_branch
          %140 = sbr.rel (%p138) target = $region20
        $region19: #{tpu_custom_call.1} parent=11 // pred_region
          %s142 = ssub.s32 16, 16
          %143 = vsyncadd [#allocation8], %s142
          %s145 = sshll.u32 [#allocation9], 4
          %s146 = int_to_ptr.vmem [resolvable:$true] %s145
          %148 = dma.hbm_to_vmem [thread:$0]  %s2, 16, %s146, [#allocation8]
        $region20: #{tpu_custom_call.1} parent=11 // pred_fallthru
          _
      $region12: #{tpu_custom_call.1} parent=5 // pred_fallthru
        _
      %p149 = scmp.lt.s32.totalorder %s16, 2
      // Predicated region
      $region21: #{tpu_custom_call.1} parent=5 // pred_check
        %p150 = pneg %p149
      $region22: #{tpu_custom_call.1} parent=5 // pred_check_branch
        %152 = sbr.rel (%p150) target = $region24
      $region23: #{tpu_custom_call.1} parent=5 // pred_region
        // Predicated region
        $region25: #{tpu_custom_call.1} parent=23 // pred_check
          %p153 = pneg %p36
        $region26: #{tpu_custom_call.1} parent=23 // pred_check_branch
          %155 = sbr.rel (%p153) target = $region28
        $region27: #{tpu_custom_call.1} parent=23 // pred_region
          %s156 = sand.u32 %s26, 1
          %s157 = scalar_lea.sflag [#allocation5], %s156
          %s158 = sand.u32 %s26, 1
          %s159 = smul.addr %s158, 64
          %s160 = scalar_lea.vmem [#allocation4], %s159
          %s162 = ssub.s32 1024, 1024
          %163 = vsyncadd %s157, %s162
          %s164 = smul.addr %s16, 8
          %s165 = smul.addr %s164, 128
          %s166 = scalar_lea.hbm %s0, %s165
          %s167 = sshll.u32 %s160, 4
          %s168 = int_to_ptr.vmem [resolvable:$true] %s167
          %173 = dma.hbm_to_vmem [thread:$0]  %s166, 1024, %s168, %s157, 128, 128, 8
        $region28: #{tpu_custom_call.1} parent=23 // pred_fallthru
          _
      $region24: #{tpu_custom_call.1} parent=5 // pred_fallthru
        _
      %p174 = scmp.le.s32.totalorder 1, %s16
      %p175 = scmp.lt.s32.totalorder %s16, 3
      %p176 = pnand %p174, %p175
      %p177 = pneg %p176
      // Predicated region
      $region29: #{tpu_custom_call.1} parent=5 // pred_check
        _
      $region30: #{tpu_custom_call.1} parent=5 // pred_check_branch
        %179 = sbr.rel (%p176) target = $region32
      $region31: #{tpu_custom_call.1} parent=5 // pred_region
        %s180 = ssub.s32 %s16, 1
        %s181 = sand.u32 %s29, 1
        %s182 = scalar_lea.sflag [#allocation5], %s181
        %s183 = sand.u32 %s29, 1
        %s184 = smul.addr %s183, 64
        %s185 = scalar_lea.vmem [#allocation4], %s184
        // Predicated region
        $region33: #{tpu_custom_call.1} parent=31 // pred_check
          %p186 = pneg %p42
        $region34: #{tpu_custom_call.1} parent=31 // pred_check_branch
          %188 = sbr.rel (%p186) target = $region36
        $region35: #{tpu_custom_call.1} parent=31 // pred_region
          %189 = dma.done %s182, 1024
        $region36: #{tpu_custom_call.1} parent=31 // pred_fallthru
          _
        // Predicated region
        $region37: #{tpu_custom_call.1} parent=31 // pred_check
          %p190 = pneg %p63
        $region38: #{tpu_custom_call.1} parent=31 // pred_check_branch
          %192 = sbr.rel (%p190) target = $region40
        $region39: #{tpu_custom_call.1} parent=31 // pred_region
          %193 = dma.done [#allocation8], 4608
        $region40: #{tpu_custom_call.1} parent=31 // pred_fallthru
          _
        // Predicated region
        $region41: #{tpu_custom_call.1} parent=31 // pred_check
          %p194 = pneg %p84
        $region42: #{tpu_custom_call.1} parent=31 // pred_check_branch
          %196 = sbr.rel (%p194) target = $region44
        $region43: #{tpu_custom_call.1} parent=31 // pred_region
          %197 = dma.done [#allocation8], 16
        $region44: #{tpu_custom_call.1} parent=31 // pred_fallthru
          _
        %s198 = sand.u32 %s29, 1
        %s199 = scalar_lea.sflag [#allocation5], %s198
        %s200 = sand.u32 %s29, 1
        %s201 = smul.addr %s200, 64
        %s202 = scalar_lea.vmem [#allocation4], %s201
        %p203 = pneg %p42
        %p204 = pneg %p39
        %p205 = pneg %p63
        %p206 = pneg %p60
        %p207 = pneg %p84
        %p208 = pneg %p81
        %p209 = pneg %p110
        %p210 = pneg %p107
        %s211 = sand.u32 %s97, 1
        %s212 = scalar_lea.sflag [#allocation6], %s211
        %s213 = sand.u32 %s97, 1
        %s214 = smul.addr %s213, 64
        %s215 = scalar_lea.vmem [#allocation10], %s214
        %v216 = vld [vmem:[%s185] sm:$0xff]
        %v217 = vld [vmem:[%s185 + $0x8] sm:$0xff]
        %v218 = vld [vmem:[%s185 + $0x10] sm:$0xff]
        %v219 = vld [vmem:[%s185 + $0x18] sm:$0xff]
        %v220 = vld [vmem:[%s185 + $0x20] sm:$0xff]
        %v221 = vld [vmem:[%s185 + $0x28] sm:$0xff]
        %v222 = vld [vmem:[%s185 + $0x30] sm:$0xff]
        %v223 = vld [vmem:[%s185 + $0x38] sm:$0xff]
        %vm224 = vcmask 261120
        %225 = vst.msk [vmem:[#allocation2] sm:$0xff] %vm224, 0.0
        %vm226 = vcmask 254976
        %227 = vst.msk [vmem:[#allocation2 + $0x8] sm:$0x3] %vm226, 0.0
        %228 = vst.msk [vmem:[#allocation2 + $0x10] sm:$0xff] %vm224, 0.0
        %229 = vst.msk [vmem:[#allocation2 + $0x18] sm:$0x3] %vm226, 0.0
        %230 = vst.msk [vmem:[#allocation2 + $0x20] sm:$0xff] %vm224, 0.0
        %231 = vst.msk [vmem:[#allocation2 + $0x28] sm:$0x3] %vm226, 0.0
        %232 = vst.msk [vmem:[#allocation2 + $0x30] sm:$0xff] %vm224, 0.0
        %233 = vst.msk [vmem:[#allocation2 + $0x38] sm:$0x3] %vm226, 0.0
        %234 = vst.msk [vmem:[#allocation2 + $0x40] sm:$0xff] %vm224, 0.0
        %235 = vst.msk [vmem:[#allocation2 + $0x48] sm:$0x3] %vm226, 0.0
        %236 = vst.msk [vmem:[#allocation2 + $0x50] sm:$0xff] %vm224, 0.0
        %237 = vst.msk [vmem:[#allocation2 + $0x58] sm:$0x3] %vm226, 0.0
        %238 = vst.msk [vmem:[#allocation2 + $0x60] sm:$0xff] %vm224, 0.0
        %239 = vst.msk [vmem:[#allocation2 + $0x68] sm:$0x3] %vm226, 0.0
        %240 = vst.msk [vmem:[#allocation2 + $0x70] sm:$0xff] %vm224, 0.0
        %241 = vst.msk [vmem:[#allocation2 + $0x78] sm:$0x3] %vm226, 0.0
        %242 = vst.msk [vmem:[#allocation2 + $0x80] sm:$0xff] %vm224, 0.0
        %243 = vst.msk [vmem:[#allocation2 + $0x88] sm:$0x3] %vm226, 0.0
        %244 = vst.msk [vmem:[#allocation2 + $0x90] sm:$0xff] %vm224, 0.0
        %245 = vst.msk [vmem:[#allocation2 + $0x98] sm:$0x3] %vm226, 0.0
        %s246 = scalar_lea.vmem [#allocation2], 16
        %247 = vst.msk [vmem:[%s246 + $0x1] sm:$0xff] %vm224, %v216
        %248 = vst.msk [vmem:[%s246 + $0x11] sm:$0xff] %vm224, %v217
        %249 = vst.msk [vmem:[%s246 + $0x21] sm:$0xff] %vm224, %v218
        %250 = vst.msk [vmem:[%s246 + $0x31] sm:$0xff] %vm224, %v219
        %251 = vst.msk [vmem:[%s246 + $0x41] sm:$0xff] %vm224, %v220
        %252 = vst.msk [vmem:[%s246 + $0x51] sm:$0xff] %vm224, %v221
        %253 = vst.msk [vmem:[%s246 + $0x61] sm:$0xff] %vm224, %v222
        %254 = vst.msk [vmem:[%s246 + $0x71] sm:$0xff] %vm224, %v223
        %vm255 = vcmask 523264
        %256 = vst.msk [vmem:[#allocation3] sm:$0xff] %vm255, 0.0
        %257 = vst.msk [vmem:[#allocation3 + $0x8] sm:$0xff] %vm255, 0.0
        %258 = vst.msk [vmem:[#allocation3 + $0x10] sm:$0xff] %vm255, 0.0
        %259 = vst.msk [vmem:[#allocation3 + $0x18] sm:$0xff] %vm255, 0.0
        %260 = vst.msk [vmem:[#allocation3 + $0x20] sm:$0xff] %vm255, 0.0
        %261 = vst.msk [vmem:[#allocation3 + $0x28] sm:$0xff] %vm255, 0.0
        %262 = vst.msk [vmem:[#allocation3 + $0x30] sm:$0xff] %vm255, 0.0
        %263 = vst.msk [vmem:[#allocation3 + $0x38] sm:$0xff] %vm255, 0.0
        %v264 = vld [vmem:[#allocation2] sm:$0xff]
        %v265 = vld [vmem:[#allocation2 + $0x8] sm:$0x3]
        %v266 = vld [vmem:[#allocation2 + $0x10] sm:$0xff]
        %v267 = vld [vmem:[#allocation2 + $0x18] sm:$0x3]
        %v268 = vld [vmem:[#allocation2 + $0x20] sm:$0xff]
        %v269 = vld [vmem:[#allocation2 + $0x28] sm:$0x3]
        %v270 = vld [vmem:[#allocation2 + $0x30] sm:$0xff]
        %v271 = vld [vmem:[#allocation2 + $0x38] sm:$0x3]
        %v272 = vld [vmem:[#allocation2 + $0x40] sm:$0xff]
        %v273 = vld [vmem:[#allocation2 + $0x48] sm:$0x3]
        %v274 = vld [vmem:[#allocation2 + $0x50] sm:$0xff]
        %v275 = vld [vmem:[#allocation2 + $0x58] sm:$0x3]
        %v276 = vld [vmem:[#allocation2 + $0x60] sm:$0xff]
        %v277 = vld [vmem:[#allocation2 + $0x68] sm:$0x3]
        %v278 = vld [vmem:[#allocation2 + $0x70] sm:$0xff]
        %v279 = vld [vmem:[#allocation2 + $0x78] sm:$0x3]
        %vm296 = vcmask 1046528
        %v297 = vrot.slane %v264, 1
        %v298 = vrot.slane %v265, 1
        %v299 = vsel %vm296, %v297, %v298
        %v300 = vrot.slane %v266, 1
        %v301 = vrot.slane %v267, 1
        %v302 = vsel %vm296, %v300, %v301
        %v303 = vrot.slane %v268, 1
        %v304 = vrot.slane %v269, 1
        %v305 = vsel %vm296, %v303, %v304
        %v306 = vrot.slane %v270, 1
        %v307 = vrot.slane %v271, 1
        %v308 = vsel %vm296, %v306, %v307
        %v309 = vrot.slane %v272, 1
        %v310 = vrot.slane %v273, 1
        %v311 = vsel %vm296, %v309, %v310
        %v312 = vrot.slane %v274, 1
        %v313 = vrot.slane %v275, 1
        %v314 = vsel %vm296, %v312, %v313
        %v315 = vrot.slane %v276, 1
        %v316 = vrot.slane %v277, 1
        %v317 = vsel %vm296, %v315, %v316
        %v318 = vrot.slane %v278, 1
        %v319 = vrot.slane %v279, 1
        %v320 = vsel %vm296, %v318, %v319
        %321 = vrot.lane.b32.xlu0 %v299, 32
        %v322 = vpop.permute.xlu0 %321
        %323 = vrot.lane.b32.xlu0 %v302, 32
        %v324 = vpop.permute.xlu0 %323
        %325 = vrot.lane.b32.xlu0 %v305, 32
        %v326 = vpop.permute.xlu0 %325
        %327 = vrot.lane.b32.xlu0 %v308, 32
        %v328 = vpop.permute.xlu0 %327
        %329 = vrot.lane.b32.xlu0 %v311, 32
        %v330 = vpop.permute.xlu0 %329
        %331 = vrot.lane.b32.xlu0 %v314, 32
        %v332 = vpop.permute.xlu0 %331
        %333 = vrot.lane.b32.xlu0 %v317, 32
        %v334 = vpop.permute.xlu0 %333
        %335 = vrot.lane.b32.xlu0 %v320, 32
        %v336 = vpop.permute.xlu0 %335
        %vm345 = vcmask 1045504
        %v346 = vrot.slane %v264, 2
        %v347 = vrot.slane %v265, 2
        %v348 = vsel %vm345, %v346, %v347
        %v349 = vrot.slane %v266, 2
        %v350 = vrot.slane %v267, 2
        %v351 = vsel %vm345, %v349, %v350
        %v352 = vrot.slane %v268, 2
        %v353 = vrot.slane %v269, 2
        %v354 = vsel %vm345, %v352, %v353
        %v355 = vrot.slane %v270, 2
        %v356 = vrot.slane %v271, 2
        %v357 = vsel %vm345, %v355, %v356
        %v358 = vrot.slane %v272, 2
        %v359 = vrot.slane %v273, 2
        %v360 = vsel %vm345, %v358, %v359
        %v361 = vrot.slane %v274, 2
        %v362 = vrot.slane %v275, 2
        %v363 = vsel %vm345, %v361, %v362
        %v364 = vrot.slane %v276, 2
        %v365 = vrot.slane %v277, 2
        %v366 = vsel %vm345, %v364, %v365
        %v367 = vrot.slane %v278, 2
        %v368 = vrot.slane %v279, 2
        %v369 = vsel %vm345, %v367, %v368
        %370 = vrot.lane.b32.xlu0 %v348, 64
        %v371 = vpop.permute.xlu0 %370
        %372 = vrot.lane.b32.xlu0 %v351, 64
        %v373 = vpop.permute.xlu0 %372
        %374 = vrot.lane.b32.xlu0 %v354, 64
        %v375 = vpop.permute.xlu0 %374
        %376 = vrot.lane.b32.xlu0 %v357, 64
        %v377 = vpop.permute.xlu0 %376
        %378 = vrot.lane.b32.xlu0 %v360, 64
        %v379 = vpop.permute.xlu0 %378
        %380 = vrot.lane.b32.xlu0 %v363, 64
        %v381 = vpop.permute.xlu0 %380
        %382 = vrot.lane.b32.xlu0 %v366, 64
        %v383 = vpop.permute.xlu0 %382
        %384 = vrot.lane.b32.xlu0 %v369, 64
        %v385 = vpop.permute.xlu0 %384
        %v394 = vsel %vm224, %v264, %v322
        %v395 = vsel %vm224, %v266, %v324
        %v396 = vsel %vm224, %v268, %v326
        %v397 = vsel %vm224, %v270, %v328
        %v398 = vsel %vm224, %v272, %v330
        %v399 = vsel %vm224, %v274, %v332
        %v400 = vsel %vm224, %v276, %v334
        %v401 = vsel %vm224, %v278, %v336
        %v402 = vsel %vm255, %v394, %v371
        %v403 = vsel %vm255, %v395, %v373
        %v404 = vsel %vm255, %v396, %v375
        %v405 = vsel %vm255, %v397, %v377
        %v406 = vsel %vm255, %v398, %v379
        %v407 = vsel %vm255, %v399, %v381
        %v408 = vsel %vm255, %v400, %v383
        %v409 = vsel %vm255, %v401, %v385
        %v410 = vld [vmem:[#allocation3] sm:$0xff]
        %v411 = vld [vmem:[#allocation3 + $0x8] sm:$0xff]
        %v412 = vld [vmem:[#allocation3 + $0x10] sm:$0xff]
        %v413 = vld [vmem:[#allocation3 + $0x18] sm:$0xff]
        %v414 = vld [vmem:[#allocation3 + $0x20] sm:$0xff]
        %v415 = vld [vmem:[#allocation3 + $0x28] sm:$0xff]
        %v416 = vld [vmem:[#allocation3 + $0x30] sm:$0xff]
        %v417 = vld [vmem:[#allocation3 + $0x38] sm:$0xff]
        %v418 = vld [vmem:[#allocation7] sm:$0xff]
        %v419 = vld [vmem:[#allocation7 + $0x8] sm:$0xff]
        %v420 = vld [vmem:[#allocation7 + $0x10] sm:$0xff]
        %v421 = vld [vmem:[#allocation7 + $0x18] sm:$0xff]
        %v422 = vld [vmem:[#allocation7 + $0x20] sm:$0xff]
        %v423 = vld [vmem:[#allocation7 + $0x28] sm:$0xff]
        %v424 = vld [vmem:[#allocation7 + $0x30] sm:$0xff]
        %v425 = vld [vmem:[#allocation7 + $0x38] sm:$0xff]
        %v426 = vld [vmem:[#allocation7 + $0x40] sm:$0xff]
        %v427 = vld [vmem:[#allocation7 + $0x48] sm:$0xff]
        %v428 = vld [vmem:[#allocation7 + $0x50] sm:$0xff]
        %v429 = vld [vmem:[#allocation7 + $0x58] sm:$0xff]
        %vm430 = vcmask 785408
        %v432 = vsel %vm430, %v402, 0
        %v435 = vsel %vm430, %v403, 0
        %v438 = vsel %vm430, %v404, 0
        %v441 = vsel %vm430, %v405, 0
        %v444 = vsel %vm430, %v406, 0
        %v447 = vsel %vm430, %v407, 0
        %v450 = vsel %vm430, %v408, 0
        %v453 = vsel %vm430, %v409, 0
        %455 = vmatprep.subr.mxu0 0.0
        %456 = vmatpush1.msra.mxu0 %v418
        %457 = vmatprep.subr.mxu0 0.0
        %458 = vmatpush1.msra.mxu0 %v419
        %459 = vmatprep.subr.mxu0 0.0
        %460 = vmatpush1.msra.mxu0 %v420
        %461 = vmatprep.subr.mxu0 0.0
        %462 = vmatpush1.msra.mxu0 %v421
        %463 = vmatprep.subr.mxu0 0.0
        %464 = vmatpush1.msra.mxu0 %v422
        %465 = vmatprep.subr.mxu0 0.0
        %466 = vmatpush1.msra.mxu0 %v423
        %467 = vmatprep.subr.mxu0 0.0
        %468 = vmatpush1.msra.mxu0 %v424
        %469 = vmatprep.subr.mxu0 0.0
        %470 = vmatpush1.msra.mxu0 %v425
        %471 = vmatprep.subr.mxu0 0.0
        %472 = vmatpush1.msra.mxu0 %v426
        %473 = vmatprep.subr.mxu0 0.0
        %474 = vmatpush1.msra.mxu0 %v427
        %475 = vmatprep.subr.mxu0 0.0
        %476 = vmatpush1.msra.mxu0 %v428
        %477 = vmatprep.subr.mxu0 0.0
        %478 = vmatpush1.msra.mxu0 %v429
        %479 = vmatprep.subr.mxu0 0.0
        %480 = vmatpush1.msra.mxu0 0.0
        %481 = vmatprep.subr.mxu0 0.0
        %482 = vmatpush1.msra.mxu0 0.0
        %483 = vmatprep.subr.mxu0 0.0
        %484 = vmatpush1.msra.mxu0 0.0
        %485 = vmatprep.subr.mxu0 0.0
        %486 = vmatpush1.msra.mxu0 0.0
        %487 = vmatprep.subr.mxu0 0.0
        %488 = vmatpush1.msra.mxu0 0.0
        %489 = vmatprep.subr.mxu0 0.0
        %490 = vmatpush1.msra.mxu0 0.0
        %491 = vmatprep.subr.mxu0 0.0
        %492 = vmatpush1.msra.mxu0 0.0
        %493 = vmatprep.subr.mxu0 0.0
        %494 = vmatpush1.msra.mxu0 0.0
        %495 = vmatprep.subr.mxu0 0.0
        %496 = vmatpush1.msra.mxu0 0.0
        %497 = vmatprep.subr.mxu0 0.0
        %498 = vmatpush1.msra.mxu0 0.0
        %499 = vmatprep.subr.mxu0 0.0
        %500 = vmatpush1.msra.mxu0 0.0
        %501 = vmatprep.subr.mxu0 0.0
        %502 = vmatpush1.msra.mxu0 0.0
        %503 = vmatprep.subr.mxu0 0.0
        %504 = vmatpush1.msra.mxu0 0.0
        %505 = vmatprep.subr.mxu0 0.0
        %506 = vmatpush1.msra.mxu0 0.0
        %507 = vmatprep.subr.mxu0 0.0
        %508 = vmatpush1.msra.mxu0 0.0
        %509 = vmatprep.subr.mxu0 0.0
        %510 = vmatpush1.msra.mxu0 0.0
        %511 = vmatprep.subr.mxu0 0.0
        %512 = vmatpush1.msra.mxu0 0.0
        %513 = vmatprep.subr.mxu0 0.0
        %514 = vmatpush1.msra.mxu0 0.0
        %515 = vmatprep.subr.mxu0 0.0
        %516 = vmatpush1.msra.mxu0 0.0
        %517 = vmatprep.subr.mxu0 0.0
        %518 = vmatpush1.msra.mxu0 0.0
        %519 = vmatprep.mubr.f32.mxu0 0.0
        %520 = vmatmul.mubr.f32.gmra.mrb[0].mxu0 %v432
        %v521 = vpop.f32.mrb[0].mxu0
        %v522 = vadd.f32 0.0, %v521
        %v523 = vpop.f32.mrb[0].mxu0
        %524 = vmatprep.mubr.f32.mxu0 0.0
        %525 = vmatmul.mubr.f32.gmra.mrb[0].mxu0 %v435
        %v526 = vpop.f32.mrb[0].mxu0
        %v527 = vadd.f32 0.0, %v526
        %v528 = vpop.f32.mrb[0].mxu0
        %529 = vmatprep.mubr.f32.mxu0 0.0
        %530 = vmatmul.mubr.f32.gmra.mrb[0].mxu0 %v438
        %v531 = vpop.f32.mrb[0].mxu0
        %v532 = vadd.f32 0.0, %v531
        %v533 = vpop.f32.mrb[0].mxu0
        %534 = vmatprep.mubr.f32.mxu0 0.0
        %535 = vmatmul.mubr.f32.gmra.mrb[0].mxu0 %v441
        %v536 = vpop.f32.mrb[0].mxu0
        %v537 = vadd.f32 0.0, %v536
        %v538 = vpop.f32.mrb[0].mxu0
        %539 = vmatprep.mubr.f32.mxu0 0.0
        %540 = vmatmul.mubr.f32.gmra.mrb[0].mxu0 %v444
        %v541 = vpop.f32.mrb[0].mxu0
        %v542 = vadd.f32 0.0, %v541
        %v543 = vpop.f32.mrb[0].mxu0
        %544 = vmatprep.mubr.f32.mxu0 0.0
        %545 = vmatmul.mubr.f32.gmra.mrb[0].mxu0 %v447
        %v546 = vpop.f32.mrb[0].mxu0
        %v547 = vadd.f32 0.0, %v546
        %v548 = vpop.f32.mrb[0].mxu0
        %549 = vmatprep.mubr.f32.mxu0 0.0
        %550 = vmatmul.mubr.f32.gmra.mrb[0].mxu0 %v450
        %v551 = vpop.f32.mrb[0].mxu0
        %v552 = vadd.f32 0.0, %v551
        %v553 = vpop.f32.mrb[0].mxu0
        %554 = vmatprep.mubr.f32.mxu0 0.0
        %555 = vmatmul.mubr.f32.gmra.mrb[0].mxu0 %v453
        %v556 = vpop.f32.mrb[0].mxu0
        %v557 = vadd.f32 0.0, %v556
        %v558 = vpop.f32.mrb[0].mxu0
        %559 = vdwg.mxu0
        %v560 = vadd.f32 %v410, %v522
        %v561 = vadd.f32 %v411, %v527
        %v562 = vadd.f32 %v412, %v532
        %v563 = vadd.f32 %v413, %v537
        %v564 = vadd.f32 %v414, %v542
        %v565 = vadd.f32 %v415, %v547
        %v566 = vadd.f32 %v416, %v552
        %v567 = vadd.f32 %v417, %v557
        %568 = vst.msk [vmem:[#allocation3] sm:$0xff] %vm255, %v560
        %569 = vst.msk [vmem:[#allocation3 + $0x8] sm:$0xff] %vm255, %v561
        %570 = vst.msk [vmem:[#allocation3 + $0x10] sm:$0xff] %vm255, %v562
        %571 = vst.msk [vmem:[#allocation3 + $0x18] sm:$0xff] %vm255, %v563
        %572 = vst.msk [vmem:[#allocation3 + $0x20] sm:$0xff] %vm255, %v564
        %573 = vst.msk [vmem:[#allocation3 + $0x28] sm:$0xff] %vm255, %v565
        %574 = vst.msk [vmem:[#allocation3 + $0x30] sm:$0xff] %vm255, %v566
        %575 = vst.msk [vmem:[#allocation3 + $0x38] sm:$0xff] %vm255, %v567
        %v576 = vld [vmem:[%s246] sm:$0xff]
        %v577 = vld [vmem:[%s246 + $0x8] sm:$0x3]
        %v578 = vld [vmem:[%s246 + $0x10] sm:$0xff]
        %v579 = vld [vmem:[%s246 + $0x18] sm:$0x3]
        %v580 = vld [vmem:[%s246 + $0x20] sm:$0xff]
        %v581 = vld [vmem:[%s246 + $0x28] sm:$0x3]
        %v582 = vld [vmem:[%s246 + $0x30] sm:$0xff]
        %v583 = vld [vmem:[%s246 + $0x38] sm:$0x3]
        %v584 = vld [vmem:[%s246 + $0x40] sm:$0xff]
        %v585 = vld [vmem:[%s246 + $0x48] sm:$0x3]
        %v586 = vld [vmem:[%s246 + $0x50] sm:$0xff]
        %v587 = vld [vmem:[%s246 + $0x58] sm:$0x3]
        %v588 = vld [vmem:[%s246 + $0x60] sm:$0xff]
        %v589 = vld [vmem:[%s246 + $0x68] sm:$0x3]
        %v590 = vld [vmem:[%s246 + $0x70] sm:$0xff]
        %v591 = vld [vmem:[%s246 + $0x78] sm:$0x3]
        %v608 = vrot.slane %v576, 1
        %v609 = vrot.slane %v577, 1
        %v610 = vsel %vm296, %v608, %v609
        %v611 = vrot.slane %v578, 1
        %v612 = vrot.slane %v579, 1
        %v613 = vsel %vm296, %v611, %v612
        %v614 = vrot.slane %v580, 1
        %v615 = vrot.slane %v581, 1
        %v616 = vsel %vm296, %v614, %v615
        %v617 = vrot.slane %v582, 1
        %v618 = vrot.slane %v583, 1
        %v619 = vsel %vm296, %v617, %v618
        %v620 = vrot.slane %v584, 1
        %v621 = vrot.slane %v585, 1
        %v622 = vsel %vm296, %v620, %v621
        %v623 = vrot.slane %v586, 1
        %v624 = vrot.slane %v587, 1
        %v625 = vsel %vm296, %v623, %v624
        %v626 = vrot.slane %v588, 1
        %v627 = vrot.slane %v589, 1
        %v628 = vsel %vm296, %v626, %v627
        %v629 = vrot.slane %v590, 1
        %v630 = vrot.slane %v591, 1
        %v631 = vsel %vm296, %v629, %v630
        %632 = vrot.lane.b32.xlu0 %v610, 32
        %v633 = vpop.permute.xlu0 %632
        %634 = vrot.lane.b32.xlu0 %v613, 32
        %v635 = vpop.permute.xlu0 %634
        %636 = vrot.lane.b32.xlu0 %v616, 32
        %v637 = vpop.permute.xlu0 %636
        %638 = vrot.lane.b32.xlu0 %v619, 32
        %v639 = vpop.permute.xlu0 %638
        %640 = vrot.lane.b32.xlu0 %v622, 32
        %v641 = vpop.permute.xlu0 %640
        %642 = vrot.lane.b32.xlu0 %v625, 32
        %v643 = vpop.permute.xlu0 %642
        %644 = vrot.lane.b32.xlu0 %v628, 32
        %v645 = vpop.permute.xlu0 %644
        %646 = vrot.lane.b32.xlu0 %v631, 32
        %v647 = vpop.permute.xlu0 %646
        %v656 = vrot.slane %v576, 2
        %v657 = vrot.slane %v577, 2
        %v658 = vsel %vm345, %v656, %v657
        %v659 = vrot.slane %v578, 2
        %v660 = vrot.slane %v579, 2
        %v661 = vsel %vm345, %v659, %v660
        %v662 = vrot.slane %v580, 2
        %v663 = vrot.slane %v581, 2
        %v664 = vsel %vm345, %v662, %v663
        %v665 = vrot.slane %v582, 2
        %v666 = vrot.slane %v583, 2
        %v667 = vsel %vm345, %v665, %v666
        %v668 = vrot.slane %v584, 2
        %v669 = vrot.slane %v585, 2
        %v670 = vsel %vm345, %v668, %v669
        %v671 = vrot.slane %v586, 2
        %v672 = vrot.slane %v587, 2
        %v673 = vsel %vm345, %v671, %v672
        %v674 = vrot.slane %v588, 2
        %v675 = vrot.slane %v589, 2
        %v676 = vsel %vm345, %v674, %v675
        %v677 = vrot.slane %v590, 2
        %v678 = vrot.slane %v591, 2
        %v679 = vsel %vm345, %v677, %v678
        %680 = vrot.lane.b32.xlu0 %v658, 64
        %v681 = vpop.permute.xlu0 %680
        %682 = vrot.lane.b32.xlu0 %v661, 64
        %v683 = vpop.permute.xlu0 %682
        %684 = vrot.lane.b32.xlu0 %v664, 64
        %v685 = vpop.permute.xlu0 %684
        %686 = vrot.lane.b32.xlu0 %v667, 64
        %v687 = vpop.permute.xlu0 %686
        %688 = vrot.lane.b32.xlu0 %v670, 64
        %v689 = vpop.permute.xlu0 %688
        %690 = vrot.lane.b32.xlu0 %v673, 64
        %v691 = vpop.permute.xlu0 %690
        %692 = vrot.lane.b32.xlu0 %v676, 64
        %v693 = vpop.permute.xlu0 %692
        %694 = vrot.lane.b32.xlu0 %v679, 64
        %v695 = vpop.permute.xlu0 %694
        %v704 = vsel %vm224, %v576, %v633
        %v705 = vsel %vm224, %v578, %v635
        %v706 = vsel %vm224, %v580, %v637
        %v707 = vsel %vm224, %v582, %v639
        %v708 = vsel %vm224, %v584, %v641
        %v709 = vsel %vm224, %v586, %v643
        %v710 = vsel %vm224, %v588, %v645
        %v711 = vsel %vm224, %v590, %v647
        %v712 = vsel %vm255, %v704, %v681
        %v713 = vsel %vm255, %v705, %v683
        %v714 = vsel %vm255, %v706, %v685
        %v715 = vsel %vm255, %v707, %v687
        %v716 = vsel %vm255, %v708, %v689
        %v717 = vsel %vm255, %v709, %v691
        %v718 = vsel %vm255, %v710, %v693
        %v719 = vsel %vm255, %v711, %v695
        %v720 = vld [vmem:[#allocation3] sm:$0xff]
        %v721 = vld [vmem:[#allocation3 + $0x8] sm:$0xff]
        %v722 = vld [vmem:[#allocation3 + $0x10] sm:$0xff]
        %v723 = vld [vmem:[#allocation3 + $0x18] sm:$0xff]
        %v724 = vld [vmem:[#allocation3 + $0x20] sm:$0xff]
        %v725 = vld [vmem:[#allocation3 + $0x28] sm:$0xff]
        %v726 = vld [vmem:[#allocation3 + $0x30] sm:$0xff]
        %v727 = vld [vmem:[#allocation3 + $0x38] sm:$0xff]
        %s728 = scalar_lea.vmem [#allocation7], 96
        %v729 = vld [vmem:[%s728] sm:$0xff]
        %v730 = vld [vmem:[%s728 + $0x8] sm:$0xff]
        %v731 = vld [vmem:[%s728 + $0x10] sm:$0xff]
        %v732 = vld [vmem:[%s728 + $0x18] sm:$0xff]
        %v733 = vld [vmem:[%s728 + $0x20] sm:$0xff]
        %v734 = vld [vmem:[%s728 + $0x28] sm:$0xff]
        %v735 = vld [vmem:[%s728 + $0x30] sm:$0xff]
        %v736 = vld [vmem:[%s728 + $0x38] sm:$0xff]
        %v737 = vld [vmem:[%s728 + $0x40] sm:$0xff]
        %v738 = vld [vmem:[%s728 + $0x48] sm:$0xff]
        %v739 = vld [vmem:[%s728 + $0x50] sm:$0xff]
        %v740 = vld [vmem:[%s728 + $0x58] sm:$0xff]
        %v742 = vsel %vm430, %v712, 0
        %v745 = vsel %vm430, %v713, 0
        %v748 = vsel %vm430, %v714, 0
        %v751 = vsel %vm430, %v715, 0
        %v754 = vsel %vm430, %v716, 0
        %v757 = vsel %vm430, %v717, 0
        %v760 = vsel %vm430, %v718, 0
        %v763 = vsel %vm430, %v719, 0
        %765 = vmatprep.subr.mxu0 0.0
        %766 = vmatpush1.msra.mxu0 %v729
        %767 = vmatprep.subr.mxu0 0.0
        %768 = vmatpush1.msra.mxu0 %v730
        %769 = vmatprep.subr.mxu0 0.0
        %770 = vmatpush1.msra.mxu0 %v731
        %771 = vmatprep.subr.mxu0 0.0
        %772 = vmatpush1.msra.mxu0 %v732
        %773 = vmatprep.subr.mxu0 0.0
        %774 = vmatpush1.msra.mxu0 %v733
        %775 = vmatprep.subr.mxu0 0.0
        %776 = vmatpush1.msra.mxu0 %v734
        %777 = vmatprep.subr.mxu0 0.0
        %778 = vmatpush1.msra.mxu0 %v735
        %779 = vmatprep.subr.mxu0 0.0
        %780 = vmatpush1.msra.mxu0 %v736
        %781 = vmatprep.subr.mxu0 0.0
        %782 = vmatpush1.msra.mxu0 %v737
        %783 = vmatprep.subr.mxu0 0.0
        %784 = vmatpush1.msra.mxu0 %v738
        %785 = vmatprep.subr.mxu0 0.0
        %786 = vmatpush1.msra.mxu0 %v739
        %787 = vmatprep.subr.mxu0 0.0
        %788 = vmatpush1.msra.mxu0 %v740
        %789 = vmatprep.subr.mxu0 0.0
        %790 = vmatpush1.msra.mxu0 0.0
        %791 = vmatprep.subr.mxu0 0.0
        %792 = vmatpush1.msra.mxu0 0.0
        %793 = vmatprep.subr.mxu0 0.0
        %794 = vmatpush1.msra.mxu0 0.0
        %795 = vmatprep.subr.mxu0 0.0
        %796 = vmatpush1.msra.mxu0 0.0
        %797 = vmatprep.subr.mxu0 0.0
        %798 = vmatpush1.msra.mxu0 0.0
        %799 = vmatprep.subr.mxu0 0.0
        %800 = vmatpush1.msra.mxu0 0.0
        %801 = vmatprep.subr.mxu0 0.0
        %802 = vmatpush1.msra.mxu0 0.0
        %803 = vmatprep.subr.mxu0 0.0
        %804 = vmatpush1.msra.mxu0 0.0
        %805 = vmatprep.subr.mxu0 0.0
        %806 = vmatpush1.msra.mxu0 0.0
        %807 = vmatprep.subr.mxu0 0.0
        %808 = vmatpush1.msra.mxu0 0.0
        %809 = vmatprep.subr.mxu0 0.0
        %810 = vmatpush1.msra.mxu0 0.0
        %811 = vmatprep.subr.mxu0 0.0
        %812 = vmatpush1.msra.mxu0 0.0
        %813 = vmatprep.subr.mxu0 0.0
        %814 = vmatpush1.msra.mxu0 0.0
        %815 = vmatprep.subr.mxu0 0.0
        %816 = vmatpush1.msra.mxu0 0.0
        %817 = vmatprep.subr.mxu0 0.0
        %818 = vmatpush1.msra.mxu0 0.0
        %819 = vmatprep.subr.mxu0 0.0
        %820 = vmatpush1.msra.mxu0 0.0
        %821 = vmatprep.subr.mxu0 0.0
        %822 = vmatpush1.msra.mxu0 0.0
        %823 = vmatprep.subr.mxu0 0.0
        %824 = vmatpush1.msra.mxu0 0.0
        %825 = vmatprep.subr.mxu0 0.0
        %826 = vmatpush1.msra.mxu0 0.0
        %827 = vmatprep.subr.mxu0 0.0
        %828 = vmatpush1.msra.mxu0 0.0
        %829 = vmatprep.mubr.f32.mxu0 0.0
        %830 = vmatmul.mubr.f32.gmra.mrb[0].mxu0 %v742
        %v831 = vpop.f32.mrb[0].mxu0
        %v832 = vadd.f32 0.0, %v831
        %v833 = vpop.f32.mrb[0].mxu0
        %834 = vmatprep.mubr.f32.mxu0 0.0
        %835 = vmatmul.mubr.f32.gmra.mrb[0].mxu0 %v745
        %v836 = vpop.f32.mrb[0].mxu0
        %v837 = vadd.f32 0.0, %v836
        %v838 = vpop.f32.mrb[0].mxu0
        %839 = vmatprep.mubr.f32.mxu0 0.0
        %840 = vmatmul.mubr.f32.gmra.mrb[0].mxu0 %v748
        %v841 = vpop.f32.mrb[0].mxu0
        %v842 = vadd.f32 0.0, %v841
        %v843 = vpop.f32.mrb[0].mxu0
        %844 = vmatprep.mubr.f32.mxu0 0.0
        %845 = vmatmul.mubr.f32.gmra.mrb[0].mxu0 %v751
        %v846 = vpop.f32.mrb[0].mxu0
        %v847 = vadd.f32 0.0, %v846
        %v848 = vpop.f32.mrb[0].mxu0
        %849 = vmatprep.mubr.f32.mxu0 0.0
        %850 = vmatmul.mubr.f32.gmra.mrb[0].mxu0 %v754
        %v851 = vpop.f32.mrb[0].mxu0
        %v852 = vadd.f32 0.0, %v851
        %v853 = vpop.f32.mrb[0].mxu0
        %854 = vmatprep.mubr.f32.mxu0 0.0
        %855 = vmatmul.mubr.f32.gmra.mrb[0].mxu0 %v757
        %v856 = vpop.f32.mrb[0].mxu0
        %v857 = vadd.f32 0.0, %v856
        %v858 = vpop.f32.mrb[0].mxu0
        %859 = vmatprep.mubr.f32.mxu0 0.0
        %860 = vmatmul.mubr.f32.gmra.mrb[0].mxu0 %v760
        %v861 = vpop.f32.mrb[0].mxu0
        %v862 = vadd.f32 0.0, %v861
        %v863 = vpop.f32.mrb[0].mxu0
        %864 = vmatprep.mubr.f32.mxu0 0.0
        %865 = vmatmul.mubr.f32.gmra.mrb[0].mxu0 %v763
        %v866 = vpop.f32.mrb[0].mxu0
        %v867 = vadd.f32 0.0, %v866
        %v868 = vpop.f32.mrb[0].mxu0
        %869 = vdwg.mxu0
        %v870 = vadd.f32 %v720, %v832
        %v871 = vadd.f32 %v721, %v837
        %v872 = vadd.f32 %v722, %v842
        %v873 = vadd.f32 %v723, %v847
        %v874 = vadd.f32 %v724, %v852
        %v875 = vadd.f32 %v725, %v857
        %v876 = vadd.f32 %v726, %v862
        %v877 = vadd.f32 %v727, %v867
        %878 = vst.msk [vmem:[#allocation3] sm:$0xff] %vm255, %v870
        %879 = vst.msk [vmem:[#allocation3 + $0x8] sm:$0xff] %vm255, %v871
        %880 = vst.msk [vmem:[#allocation3 + $0x10] sm:$0xff] %vm255, %v872
        %881 = vst.msk [vmem:[#allocation3 + $0x18] sm:$0xff] %vm255, %v873
        %882 = vst.msk [vmem:[#allocation3 + $0x20] sm:$0xff] %vm255, %v874
        %883 = vst.msk [vmem:[#allocation3 + $0x28] sm:$0xff] %vm255, %v875
        %884 = vst.msk [vmem:[#allocation3 + $0x30] sm:$0xff] %vm255, %v876
        %885 = vst.msk [vmem:[#allocation3 + $0x38] sm:$0xff] %vm255, %v877
        %s886 = scalar_lea.vmem [#allocation2], 32
        %v887 = vld [vmem:[%s886] sm:$0xff]
        %v888 = vld [vmem:[%s886 + $0x8] sm:$0x3]
        %v889 = vld [vmem:[%s886 + $0x10] sm:$0xff]
        %v890 = vld [vmem:[%s886 + $0x18] sm:$0x3]
        %v891 = vld [vmem:[%s886 + $0x20] sm:$0xff]
        %v892 = vld [vmem:[%s886 + $0x28] sm:$0x3]
        %v893 = vld [vmem:[%s886 + $0x30] sm:$0xff]
        %v894 = vld [vmem:[%s886 + $0x38] sm:$0x3]
        %v895 = vld [vmem:[%s886 + $0x40] sm:$0xff]
        %v896 = vld [vmem:[%s886 + $0x48] sm:$0x3]
        %v897 = vld [vmem:[%s886 + $0x50] sm:$0xff]
        %v898 = vld [vmem:[%s886 + $0x58] sm:$0x3]
        %v899 = vld [vmem:[%s886 + $0x60] sm:$0xff]
        %v900 = vld [vmem:[%s886 + $0x68] sm:$0x3]
        %v901 = vld [vmem:[%s886 + $0x70] sm:$0xff]
        %v902 = vld [vmem:[%s886 + $0x78] sm:$0x3]
        %v919 = vrot.slane %v887, 1
        %v920 = vrot.slane %v888, 1
        %v921 = vsel %vm296, %v919, %v920
        %v922 = vrot.slane %v889, 1
        %v923 = vrot.slane %v890, 1
        %v924 = vsel %vm296, %v922, %v923
        %v925 = vrot.slane %v891, 1
        %v926 = vrot.slane %v892, 1
        %v927 = vsel %vm296, %v925, %v926
        %v928 = vrot.slane %v893, 1
        %v929 = vrot.slane %v894, 1
        %v930 = vsel %vm296, %v928, %v929
        %v931 = vrot.slane %v895, 1
        %v932 = vrot.slane %v896, 1
        %v933 = vsel %vm296, %v931, %v932
        %v934 = vrot.slane %v897, 1
        %v935 = vrot.slane %v898, 1
        %v936 = vsel %vm296, %v934, %v935
        %v937 = vrot.slane %v899, 1
        %v938 = vrot.slane %v900, 1
        %v939 = vsel %vm296, %v937, %v938
        %v940 = vrot.slane %v901, 1
        %v941 = vrot.slane %v902, 1
        %v942 = vsel %vm296, %v940, %v941
        %943 = vrot.lane.b32.xlu0 %v921, 32
        %v944 = vpop.permute.xlu0 %943
        %945 = vrot.lane.b32.xlu0 %v924, 32
        %v946 = vpop.permute.xlu0 %945
        %947 = vrot.lane.b32.xlu0 %v927, 32
        %v948 = vpop.permute.xlu0 %947
        %949 = vrot.lane.b32.xlu0 %v930, 32
        %v950 = vpop.permute.xlu0 %949
        %951 = vrot.lane.b32.xlu0 %v933, 32
        %v952 = vpop.permute.xlu0 %951
        %953 = vrot.lane.b32.xlu0 %v936, 32
        %v954 = vpop.permute.xlu0 %953
        %955 = vrot.lane.b32.xlu0 %v939, 32
        %v956 = vpop.permute.xlu0 %955
        %957 = vrot.lane.b32.xlu0 %v942, 32
        %v958 = vpop.permute.xlu0 %957
        %v967 = vrot.slane %v887, 2
        %v968 = vrot.slane %v888, 2
        %v969 = vsel %vm345, %v967, %v968
        %v970 = vrot.slane %v889, 2
        %v971 = vrot.slane %v890, 2
        %v972 = vsel %vm345, %v970, %v971
        %v973 = vrot.slane %v891, 2
        %v974 = vrot.slane %v892, 2
        %v975 = vsel %vm345, %v973, %v974
        %v976 = vrot.slane %v893, 2
        %v977 = vrot.slane %v894, 2
        %v978 = vsel %vm345, %v976, %v977
        %v979 = vrot.slane %v895, 2
        %v980 = vrot.slane %v896, 2
        %v981 = vsel %vm345, %v979, %v980
        %v982 = vrot.slane %v897, 2
        %v983 = vrot.slane %v898, 2
        %v984 = vsel %vm345, %v982, %v983
        %v985 = vrot.slane %v899, 2
        %v986 = vrot.slane %v900, 2
        %v987 = vsel %vm345, %v985, %v986
        %v988 = vrot.slane %v901, 2
        %v989 = vrot.slane %v902, 2
        %v990 = vsel %vm345, %v988, %v989
        %991 = vrot.lane.b32.xlu0 %v969, 64
        %v992 = vpop.permute.xlu0 %991
        %993 = vrot.lane.b32.xlu0 %v972, 64
        %v994 = vpop.permute.xlu0 %993
        %995 = vrot.lane.b32.xlu0 %v975, 64
        %v996 = vpop.permute.xlu0 %995
        %997 = vrot.lane.b32.xlu0 %v978, 64
        %v998 = vpop.permute.xlu0 %997
        %999 = vrot.lane.b32.xlu0 %v981, 64
        %v1000 = vpop.permute.xlu0 %999
        %1001 = vrot.lane.b32.xlu0 %v984, 64
        %v1002 = vpop.permute.xlu0 %1001
        %1003 = vrot.lane.b32.xlu0 %v987, 64
        %v1004 = vpop.permute.xlu0 %1003
        %1005 = vrot.lane.b32.xlu0 %v990, 64
        %v1006 = vpop.permute.xlu0 %1005
        %v1015 = vsel %vm224, %v887, %v944
        %v1016 = vsel %vm224, %v889, %v946
        %v1017 = vsel %vm224, %v891, %v948
        %v1018 = vsel %vm224, %v893, %v950
        %v1019 = vsel %vm224, %v895, %v952
        %v1020 = vsel %vm224, %v897, %v954
        %v1021 = vsel %vm224, %v899, %v956
        %v1022 = vsel %vm224, %v901, %v958
        %v1023 = vsel %vm255, %v1015, %v992
        %v1024 = vsel %vm255, %v1016, %v994
        %v1025 = vsel %vm255, %v1017, %v996
        %v1026 = vsel %vm255, %v1018, %v998
        %v1027 = vsel %vm255, %v1019, %v1000
        %v1028 = vsel %vm255, %v1020, %v1002
        %v1029 = vsel %vm255, %v1021, %v1004
        %v1030 = vsel %vm255, %v1022, %v1006
        %v1031 = vld [vmem:[#allocation3] sm:$0xff]
        %v1032 = vld [vmem:[#allocation3 + $0x8] sm:$0xff]
        %v1033 = vld [vmem:[#allocation3 + $0x10] sm:$0xff]
        %v1034 = vld [vmem:[#allocation3 + $0x18] sm:$0xff]
        %v1035 = vld [vmem:[#allocation3 + $0x20] sm:$0xff]
        %v1036 = vld [vmem:[#allocation3 + $0x28] sm:$0xff]
        %v1037 = vld [vmem:[#allocation3 + $0x30] sm:$0xff]
        %v1038 = vld [vmem:[#allocation3 + $0x38] sm:$0xff]
        %s1039 = scalar_lea.vmem [#allocation7], 192
        %v1040 = vld [vmem:[%s1039] sm:$0xff]
        %v1041 = vld [vmem:[%s1039 + $0x8] sm:$0xff]
        %v1042 = vld [vmem:[%s1039 + $0x10] sm:$0xff]
        %v1043 = vld [vmem:[%s1039 + $0x18] sm:$0xff]
        %v1044 = vld [vmem:[%s1039 + $0x20] sm:$0xff]
        %v1045 = vld [vmem:[%s1039 + $0x28] sm:$0xff]
        %v1046 = vld [vmem:[%s1039 + $0x30] sm:$0xff]
        %v1047 = vld [vmem:[%s1039 + $0x38] sm:$0xff]
        %v1048 = vld [vmem:[%s1039 + $0x40] sm:$0xff]
        %v1049 = vld [vmem:[%s1039 + $0x48] sm:$0xff]
        %v1050 = vld [vmem:[%s1039 + $0x50] sm:$0xff]
        %v1051 = vld [vmem:[%s1039 + $0x58] sm:$0xff]
        %v1053 = vsel %vm430, %v1023, 0
        %v1056 = vsel %vm430, %v1024, 0
        %v1059 = vsel %vm430, %v1025, 0
        %v1062 = vsel %vm430, %v1026, 0
        %v1065 = vsel %vm430, %v1027, 0
        %v1068 = vsel %vm430, %v1028, 0
        %v1071 = vsel %vm430, %v1029, 0
        %v1074 = vsel %vm430, %v1030, 0
        %1076 = vmatprep.subr.mxu0 0.0
        %1077 = vmatpush1.msra.mxu0 %v1040
        %1078 = vmatprep.subr.mxu0 0.0
        %1079 = vmatpush1.msra.mxu0 %v1041
        %1080 = vmatprep.subr.mxu0 0.0
        %1081 = vmatpush1.msra.mxu0 %v1042
        %1082 = vmatprep.subr.mxu0 0.0
        %1083 = vmatpush1.msra.mxu0 %v1043
        %1084 = vmatprep.subr.mxu0 0.0
        %1085 = vmatpush1.msra.mxu0 %v1044
        %1086 = vmatprep.subr.mxu0 0.0
        %1087 = vmatpush1.msra.mxu0 %v1045
        %1088 = vmatprep.subr.mxu0 0.0
        %1089 = vmatpush1.msra.mxu0 %v1046
        %1090 = vmatprep.subr.mxu0 0.0
        %1091 = vmatpush1.msra.mxu0 %v1047
        %1092 = vmatprep.subr.mxu0 0.0
        %1093 = vmatpush1.msra.mxu0 %v1048
        %1094 = vmatprep.subr.mxu0 0.0
        %1095 = vmatpush1.msra.mxu0 %v1049
        %1096 = vmatprep.subr.mxu0 0.0
        %1097 = vmatpush1.msra.mxu0 %v1050
        %1098 = vmatprep.subr.mxu0 0.0
        %1099 = vmatpush1.msra.mxu0 %v1051
        %1100 = vmatprep.subr.mxu0 0.0
        %1101 = vmatpush1.msra.mxu0 0.0
        %1102 = vmatprep.subr.mxu0 0.0
        %1103 = vmatpush1.msra.mxu0 0.0
        %1104 = vmatprep.subr.mxu0 0.0
        %1105 = vmatpush1.msra.mxu0 0.0
        %1106 = vmatprep.subr.mxu0 0.0
        %1107 = vmatpush1.msra.mxu0 0.0
        %1108 = vmatprep.subr.mxu0 0.0
        %1109 = vmatpush1.msra.mxu0 0.0
        %1110 = vmatprep.subr.mxu0 0.0
        %1111 = vmatpush1.msra.mxu0 0.0
        %1112 = vmatprep.subr.mxu0 0.0
        %1113 = vmatpush1.msra.mxu0 0.0
        %1114 = vmatprep.subr.mxu0 0.0
        %1115 = vmatpush1.msra.mxu0 0.0
        %1116 = vmatprep.subr.mxu0 0.0
        %1117 = vmatpush1.msra.mxu0 0.0
        %1118 = vmatprep.subr.mxu0 0.0
        %1119 = vmatpush1.msra.mxu0 0.0
        %1120 = vmatprep.subr.mxu0 0.0
        %1121 = vmatpush1.msra.mxu0 0.0
        %1122 = vmatprep.subr.mxu0 0.0
        %1123 = vmatpush1.msra.mxu0 0.0
        %1124 = vmatprep.subr.mxu0 0.0
        %1125 = vmatpush1.msra.mxu0 0.0
        %1126 = vmatprep.subr.mxu0 0.0
        %1127 = vmatpush1.msra.mxu0 0.0
        %1128 = vmatprep.subr.mxu0 0.0
        %1129 = vmatpush1.msra.mxu0 0.0
        %1130 = vmatprep.subr.mxu0 0.0
        %1131 = vmatpush1.msra.mxu0 0.0
        %1132 = vmatprep.subr.mxu0 0.0
        %1133 = vmatpush1.msra.mxu0 0.0
        %1134 = vmatprep.subr.mxu0 0.0
        %1135 = vmatpush1.msra.mxu0 0.0
        %1136 = vmatprep.subr.mxu0 0.0
        %1137 = vmatpush1.msra.mxu0 0.0
        %1138 = vmatprep.subr.mxu0 0.0
        %1139 = vmatpush1.msra.mxu0 0.0
        %1140 = vmatprep.mubr.f32.mxu0 0.0
        %1141 = vmatmul.mubr.f32.gmra.mrb[0].mxu0 %v1053
        %v1142 = vpop.f32.mrb[0].mxu0
        %v1143 = vadd.f32 0.0, %v1142
        %v1144 = vpop.f32.mrb[0].mxu0
        %1145 = vmatprep.mubr.f32.mxu0 0.0
        %1146 = vmatmul.mubr.f32.gmra.mrb[0].mxu0 %v1056
        %v1147 = vpop.f32.mrb[0].mxu0
        %v1148 = vadd.f32 0.0, %v1147
        %v1149 = vpop.f32.mrb[0].mxu0
        %1150 = vmatprep.mubr.f32.mxu0 0.0
        %1151 = vmatmul.mubr.f32.gmra.mrb[0].mxu0 %v1059
        %v1152 = vpop.f32.mrb[0].mxu0
        %v1153 = vadd.f32 0.0, %v1152
        %v1154 = vpop.f32.mrb[0].mxu0
        %1155 = vmatprep.mubr.f32.mxu0 0.0
        %1156 = vmatmul.mubr.f32.gmra.mrb[0].mxu0 %v1062
        %v1157 = vpop.f32.mrb[0].mxu0
        %v1158 = vadd.f32 0.0, %v1157
        %v1159 = vpop.f32.mrb[0].mxu0
        %1160 = vmatprep.mubr.f32.mxu0 0.0
        %1161 = vmatmul.mubr.f32.gmra.mrb[0].mxu0 %v1065
        %v1162 = vpop.f32.mrb[0].mxu0
        %v1163 = vadd.f32 0.0, %v1162
        %v1164 = vpop.f32.mrb[0].mxu0
        %1165 = vmatprep.mubr.f32.mxu0 0.0
        %1166 = vmatmul.mubr.f32.gmra.mrb[0].mxu0 %v1068
        %v1167 = vpop.f32.mrb[0].mxu0
        %v1168 = vadd.f32 0.0, %v1167
        %v1169 = vpop.f32.mrb[0].mxu0
        %1170 = vmatprep.mubr.f32.mxu0 0.0
        %1171 = vmatmul.mubr.f32.gmra.mrb[0].mxu0 %v1071
        %v1172 = vpop.f32.mrb[0].mxu0
        %v1173 = vadd.f32 0.0, %v1172
        %v1174 = vpop.f32.mrb[0].mxu0
        %1175 = vmatprep.mubr.f32.mxu0 0.0
        %1176 = vmatmul.mubr.f32.gmra.mrb[0].mxu0 %v1074
        %v1177 = vpop.f32.mrb[0].mxu0
        %v1178 = vadd.f32 0.0, %v1177
        %v1179 = vpop.f32.mrb[0].mxu0
        %1180 = vdwg.mxu0
        %v1181 = vadd.f32 %v1031, %v1143
        %v1182 = vadd.f32 %v1032, %v1148
        %v1183 = vadd.f32 %v1033, %v1153
        %v1184 = vadd.f32 %v1034, %v1158
        %v1185 = vadd.f32 %v1035, %v1163
        %v1186 = vadd.f32 %v1036, %v1168
        %v1187 = vadd.f32 %v1037, %v1173
        %v1188 = vadd.f32 %v1038, %v1178
        %1189 = vst.msk [vmem:[#allocation3] sm:$0xff] %vm255, %v1181
        %1190 = vst.msk [vmem:[#allocation3 + $0x8] sm:$0xff] %vm255, %v1182
        %1191 = vst.msk [vmem:[#allocation3 + $0x10] sm:$0xff] %vm255, %v1183
        %1192 = vst.msk [vmem:[#allocation3 + $0x18] sm:$0xff] %vm255, %v1184
        %1193 = vst.msk [vmem:[#allocation3 + $0x20] sm:$0xff] %vm255, %v1185
        %1194 = vst.msk [vmem:[#allocation3 + $0x28] sm:$0xff] %vm255, %v1186
        %1195 = vst.msk [vmem:[#allocation3 + $0x30] sm:$0xff] %vm255, %v1187
        %1196 = vst.msk [vmem:[#allocation3 + $0x38] sm:$0xff] %vm255, %v1188
        %v1197 = vld [vmem:[#allocation3] sm:$0xff]
        %v1198 = vld [vmem:[#allocation3 + $0x8] sm:$0xff]
        %v1199 = vld [vmem:[#allocation3 + $0x10] sm:$0xff]
        %v1200 = vld [vmem:[#allocation3 + $0x18] sm:$0xff]
        %v1201 = vld [vmem:[#allocation3 + $0x20] sm:$0xff]
        %v1202 = vld [vmem:[#allocation3 + $0x28] sm:$0xff]
        %v1203 = vld [vmem:[#allocation3 + $0x30] sm:$0xff]
        %v1204 = vld [vmem:[#allocation3 + $0x38] sm:$0xff]
        %v1205 = vld [vmem:[#allocation9] sm:$0x1]
        %v1207 = vlaneseq
        %v1208 = vshrl.u32 %v1207, 7
        %v1209 = vsub.s32 0, %v1208
        %v1210 = vrot.slane %v1205, %v1209
        %v1212 = vadd.f32 %v1197, %v1210
        %v1213 = vadd.f32 %v1198, %v1210
        %v1214 = vadd.f32 %v1199, %v1210
        %v1215 = vadd.f32 %v1200, %v1210
        %v1216 = vadd.f32 %v1201, %v1210
        %v1217 = vadd.f32 %v1202, %v1210
        %v1218 = vadd.f32 %v1203, %v1210
        %v1219 = vadd.f32 %v1204, %v1210
        %1220 = vst.msk [vmem:[%s215] sm:$0xff] %vm255, %v1212
        %1221 = vst.msk [vmem:[%s215 + $0x8] sm:$0xff] %vm255, %v1213
        %1222 = vst.msk [vmem:[%s215 + $0x10] sm:$0xff] %vm255, %v1214
        %1223 = vst.msk [vmem:[%s215 + $0x18] sm:$0xff] %vm255, %v1215
        %1224 = vst.msk [vmem:[%s215 + $0x20] sm:$0xff] %vm255, %v1216
        %1225 = vst.msk [vmem:[%s215 + $0x28] sm:$0xff] %vm255, %v1217
        %1226 = vst.msk [vmem:[%s215 + $0x30] sm:$0xff] %vm255, %v1218
        %1227 = vst.msk [vmem:[%s215 + $0x38] sm:$0xff] %vm255, %v1219
        %s1228 = sand.u32 %s97, 1
        %s1229 = scalar_lea.sflag [#allocation6], %s1228
        %s1230 = sand.u32 %s97, 1
        %s1231 = smul.addr %s1230, 64
        %s1232 = scalar_lea.vmem [#allocation10], %s1231
        // Predicated region
        $region45: #{tpu_custom_call.1} parent=31 // pred_check
          %p1233 = pneg %p107
        $region46: #{tpu_custom_call.1} parent=31 // pred_check_branch
          %1235 = sbr.rel (%p1233) target = $region48
        $region47: #{tpu_custom_call.1} parent=31 // pred_region
          %s1237 = ssub.s32 1024, 1024
          %1238 = vsyncadd %s1229, %s1237
          %s1239 = smul.addr %s21, 8
          %s1240 = smul.addr %s1239, 128
          %s1241 = scalar_lea.hbm %s3, %s1240
          %s1242 = sshll.u32 %s1232, 4
          %s1243 = int_to_ptr.vmem [resolvable:$true] %s1242
          %1248 = dma.vmem_to_hbm [thread:$0]  %s1243, 1024, %s1241, %s1229, 128, 128, 8
        $region48: #{tpu_custom_call.1} parent=31 // pred_fallthru
          _
      $region32: #{tpu_custom_call.1} parent=5 // pred_fallthru
        _
      %p1249 = scmp.le.s32.totalorder 2, %s16
      // Predicated region
      $region49: #{tpu_custom_call.1} parent=5 // pred_check
        %p1250 = pneg %p1249
      $region50: #{tpu_custom_call.1} parent=5 // pred_check_branch
        %1252 = sbr.rel (%p1250) target = $region52
      $region51: #{tpu_custom_call.1} parent=5 // pred_region
        %s1253 = ssub.s32 %s16, 2
        // Predicated region
        $region53: #{tpu_custom_call.1} parent=51 // pred_check
          %p1254 = pneg %p113
        $region54: #{tpu_custom_call.1} parent=51 // pred_check_branch
          %1256 = sbr.rel (%p1254) target = $region56
        $region55: #{tpu_custom_call.1} parent=51 // pred_region
          %s1257 = sand.u32 %s98, 1
          %s1258 = scalar_lea.sflag [#allocation6], %s1257
          %s1259 = sand.u32 %s98, 1
          %s1260 = smul.addr %s1259, 64
          %s1261 = scalar_lea.vmem [#allocation10], %s1260
          %1262 = dma.done %s1258, 1024
        $region56: #{tpu_custom_call.1} parent=51 // pred_fallthru
          _
      $region52: #{tpu_custom_call.1} parent=5 // pred_fallthru
        _
    $region6: #{tpu_custom_call.1} parent=1 // loop_footer
      %s20 = sadd.s32 1, %s16
    $region7: #{tpu_custom_call.1} parent=1 // loop_footer_branch
      %15 = sbr.rel target = $region3
    $region8: #{tpu_custom_call.1} parent=1 // loop_exit
      _
    %1263 = vsyncpa [#allocation5], 1
    %s1264 = scalar_lea.sflag [#allocation5], 1
    %1265 = vsyncpa %s1264, 1
    %1266 = vsyncpa [#allocation8], 1
    %1267 = vsyncpa [#allocation6], 1
    %s1268 = scalar_lea.sflag [#allocation6], 1
    %1269 = vsyncpa %s1268, 1

</llo_original>
